<compile_context>
chip_gen: v7x
topology: tpu7x:2x2x1
jax: 0.10.0
libtpu: 0.0.40
codegen_flags: <defaults>
</compile_context>

<pallas_src>
import jax
import jax.numpy as jnp
from jax.experimental import pallas as pl
from jax.experimental.pallas import tpu as pltpu


def _round_up(x, m):
    return (x + m - 1) // m * m


# ----------------------------------------------------------------------------
# Fused kernel: split-K 1x1 conv -> +b1 -> ReLU -> 1x1 conv -> +b2
#               [-> per-tile softmax cross-entropy partials]
# Layout: channels on sublanes, pixels on lanes.
# ----------------------------------------------------------------------------
def _make_kernel(emit_logits, compute_loss, hw, tile_px):
    def kernel(*refs):
        if compute_loss:
            lg_ref, pr_ref, im_ref, lb_ref = refs[:4]
            w1l_ref, w1p_ref, w1i_ref, b1_ref, w2_ref, b2_ref = refs[4:10]
            out_refs = refs[10:]
        else:
            lg_ref, pr_ref, im_ref = refs[:3]
            w1l_ref, w1p_ref, w1i_ref, b1_ref, w2_ref, b2_ref = refs[3:9]
            out_refs = refs[9:]
        o = 0
        if emit_logits:
            logit_ref = out_refs[o]
            o += 1
        if compute_loss:
            part_ref = out_refs[o]

        lg = lg_ref[0]                      # (C, T)       pixels on lanes
        pr = pr_ref[0]                      # (C, T)
        im = im_ref[0]                      # (C_img, T)

        # concat([lg, pr, im], channel) @ w1  ==  sum of three split-K dots
        # (the concat is never materialized, in HBM or VMEM).
        h = (jnp.dot(w1l_ref[...], lg, preferred_element_type=jnp.float32)
             + jnp.dot(w1p_ref[...], pr, preferred_element_type=jnp.float32)
             + jnp.dot(w1i_ref[...], im, preferred_element_type=jnp.float32)
             + b1_ref[...])                 # (hidden, T)
        h = jnp.maximum(h, 0.0)             # ReLU
        out = (jnp.dot(w2_ref[...], h, preferred_element_type=jnp.float32)
               + b2_ref[...])               # (cout, T)

        if emit_logits:
            logit_ref[0] = out.astype(logit_ref.dtype)   # lane-dense store

        if compute_loss:
            labels = lb_ref[0]                              # (1, T) int32
            m = jnp.max(out, axis=0, keepdims=True)         # (1, T)
            lse = m + jnp.log(jnp.sum(jnp.exp(out - m), axis=0, keepdims=True))
            cls = jax.lax.broadcasted_iota(jnp.int32, out.shape, 0)
            correct = jnp.sum(jnp.where(cls == labels, out, 0.0),
                              axis=0, keepdims=True)        # (1, T)
            # valid = real pixel (ragged last tile) AND label not ignored (<0).
            px = (pl.program_id(1) * tile_px
                  + jax.lax.broadcasted_iota(jnp.int32, labels.shape, 1))
            valid = (labels >= 0) & (px < hw)
            per_px = jnp.where(valid, lse - correct, 0.0)
            loss_sum = jnp.sum(per_px)
            cnt_sum = jnp.sum(valid.astype(jnp.float32))
            # One tiny (2,128) partial block per grid step:
            #   [0, 0] = sum of per-pixel losses, [1, 0] = valid-pixel count.
            row = jax.lax.broadcasted_iota(jnp.int32, (2, 128), 0)
            lane = jax.lax.broadcasted_iota(jnp.int32, (2, 128), 1)
            part = jnp.where((row == 0) & (lane == 0), loss_sum,
                             jnp.where((row == 1) & (lane == 0), cnt_sum, 0.0))
            part_ref[0, 0] = part

    return kernel


# ----------------------------------------------------------------------------
# CrossEntropyNet.forward equivalent
# ----------------------------------------------------------------------------
def cross_entropy_net_forward(params, logits_nchw, probs_nchw, images_nchw,
                              labels=None, get_logits=True, get_loss=False,
                              max_tile_px=32768):
    """Mirrors CrossEntropyNet.forward; returns dict with 'logits' / 'loss'."""
    result = {}
    compute_loss = bool(get_loss) and labels is not None
    emit_logits = bool(get_logits)
    if not (emit_logits or compute_loss):
        return result

    B, C, H, W = logits_nchw.shape
    C_img = images_nchw.shape[1]
    hw = H * W

    # NCHW-native: pure reshape views, no transpose / pad / cast passes.
    lg = logits_nchw.reshape(B, C, hw)
    pr = probs_nchw.reshape(B, C, hw)
    im = images_nchw.reshape(B, C_img, hw)

    # Small weights, pre-transposed for the pixels-on-lanes formulation.
    w1 = params["w1"].astype(jnp.float32)
    w1lT = w1[:C].T                                     # (hidden, C)
    w1pT = w1[C:2 * C].T                                # (hidden, C)
    w1iT = w1[2 * C:2 * C + C_img].T                    # (hidden, C_img)
    b1 = params["b1"].astype(jnp.float32).reshape(-1, 1)    # (hidden, 1)
    w2T = params["w2"].astype(jnp.float32).T                # (cout, hidden)
    b2 = params["b2"].astype(jnp.float32).reshape(-1, 1)    # (cout, 1)
    hidden = w1.shape[1]
    cout = w2T.shape[0]

    # Pixel tile: full image row if it fits, else a large multiple of 128.
    # Keep >= 2 grid steps when B == 1 so both v7x TensorCores get work.
    if hw <= max_tile_px:
        if B == 1 and hw >= 512:
            tile = min(_round_up(pl.cdiv(hw, 2), 128), hw)
        else:
            tile = hw
    else:
        tile = max_tile_px                  # multiple of 128 by construction
    n_tiles = pl.cdiv(hw, tile)
    grid = (B, n_tiles)

    in_specs = [
        pl.BlockSpec((1, C, tile), lambda b, i: (b, 0, i)),
        pl.BlockSpec((1, C, tile), lambda b, i: (b, 0, i)),
        pl.BlockSpec((1, C_img, tile), lambda b, i: (b, 0, i)),
    ]
    inputs = [lg, pr, im]
    if compute_loss:
        lab = labels.reshape(B, 1, hw).astype(jnp.int32)
        in_specs.append(pl.BlockSpec((1, 1, tile), lambda b, i: (b, 0, i)))
        inputs.append(lab)
    in_specs += [
        pl.BlockSpec((hidden, C), lambda b, i: (0, 0)),
        pl.BlockSpec((hidden, C), lambda b, i: (0, 0)),
        pl.BlockSpec((hidden, C_img), lambda b, i: (0, 0)),
        pl.BlockSpec((hidden, 1), lambda b, i: (0, 0)),
        pl.BlockSpec((cout, hidden), lambda b, i: (0, 0)),
        pl.BlockSpec((cout, 1), lambda b, i: (0, 0)),
    ]
    inputs += [w1lT, w1pT, w1iT, b1, w2T, b2]

    out_shape = []
    out_specs = []
    if emit_logits:
        out_shape.append(jax.ShapeDtypeStruct((B, cout, hw), jnp.float32))
        out_specs.append(pl.BlockSpec((1, cout, tile), lambda b, i: (b, 0, i)))
    if compute_loss:
        out_shape.append(jax.ShapeDtypeStruct((B, n_tiles, 2, 128), jnp.float32))
        out_specs.append(pl.BlockSpec((1, 1, 2, 128), lambda b, i: (b, i, 0, 0)))

    kernel = _make_kernel(emit_logits, compute_loss, hw, tile)
    outs = pl.pallas_call(
        kernel,
        out_shape=tuple(out_shape),
        grid=grid,
        in_specs=in_specs,
        out_specs=tuple(out_specs),
        compiler_params=pltpu.CompilerParams(
            dimension_semantics=("parallel", "parallel"),
            vmem_limit_bytes=48 * 1024 * 1024),
    )(*inputs)
    if not isinstance(outs, (list, tuple)):
        outs = (outs,)

    idx = 0
    if emit_logits:
        result["logits"] = outs[idx].reshape(B, cout, H, W)   # native NCHW
        idx += 1
    if compute_loss:
        part = outs[idx]
        loss_sum = jnp.sum(part[:, :, 0, 0])
        valid_cnt = jnp.sum(part[:, :, 1, 0])
        result["loss"] = loss_sum / jnp.maximum(valid_cnt, 1.0)
    return result


# ----------------------------------------------------------------------------
# Pure-JAX reference (f32, ignore_index-aware)
# ----------------------------------------------------------------------------
def _ref_forward(params, logits_nchw, probs_nchw, images_nchw, labels):
    B, C, H, W = logits_nchw.shape
    x = jnp.concatenate([logits_nchw, probs_nchw, images_nchw], axis=1)
    x_rows = jnp.transpose(x, (0, 2, 3, 1)).reshape(B * H * W, -1).astype(jnp.float32)
    h = jnp.maximum(x_rows @ params["w1"] + params["b1"], 0.0)
    out = h @ params["w2"] + params["b2"]
    cout = params["w2"].shape[1]
    lp = jax.nn.log_softmax(out, axis=-1)
    lab = labels.reshape(-1)
    valid = lab >= 0
    nll = -jnp.take_along_axis(lp, jnp.maximum(lab, 0)[:, None], axis=-1)[:, 0]
    loss = (jnp.sum(jnp.where(valid, nll, 0.0))
            / jnp.maximum(jnp.sum(valid.astype(jnp.float32)), 1.0))
    out_nchw = jnp.transpose(out.reshape(B, H, W, cout), (0, 3, 1, 2))
    return out_nchw, loss


if __name__ == "__main__":
    B, num_classes, C_img, H, W = 2, 4, 3, 16, 16
    hidden = 32
    cin = 2 * num_classes + C_img  # 11

    key = jax.random.PRNGKey(0)
    k1, k2, k3, k4, k5, k6 = jax.random.split(key, 6)

    # deterministic synthetic parameters of the refinement net
    params = {
        "w1": jax.random.normal(k1, (cin, hidden), jnp.float32) * 0.1,
        "b1": jnp.zeros((1, hidden), jnp.float32),
        "w2": jax.random.normal(k2, (hidden, num_classes), jnp.float32) * 0.1,
        "b2": jnp.zeros((1, num_classes), jnp.float32),
    }

    # deterministic example inputs (PyTorch-style NCHW)
    logits = jax.random.normal(k3, (B, num_classes, H, W), jnp.float32)
    probabilities = jax.nn.softmax(
        jax.random.normal(k4, (B, num_classes, H, W), jnp.float32), axis=1)
    images = jax.random.normal(k5, (B, C_img, H, W), jnp.float32)
    labels = jax.random.randint(k6, (B, H, W), 0, num_classes, jnp.int32)
    labels = labels.at[0, 0, :5].set(-100)   # exercise ignore_index
    labels = labels.at[1, 3, 7].set(-1)

    result = cross_entropy_net_forward(
        params, logits, probabilities, images,
        labels=labels, get_logits=True, get_loss=True)
    out_logits = jax.block_until_ready(result["logits"])
    out_loss = jax.block_until_ready(result["loss"])

    ref_logits, ref_loss = _ref_forward(params, logits, probabilities, images, labels)
    assert out_logits.shape == (B, num_classes, H, W)
    assert jnp.allclose(out_logits, ref_logits, atol=1e-3, rtol=1e-3), (
        float(jnp.max(jnp.abs(out_logits - ref_logits))))
    assert jnp.allclose(out_loss, ref_loss, atol=1e-3, rtol=1e-3), (
        float(out_loss), float(ref_loss))

    # loss-only path: no logits writeback at all
    loss_only = cross_entropy_net_forward(
        params, logits, probabilities, images,
        labels=labels, get_logits=False, get_loss=True)
    l2 = jax.block_until_ready(loss_only["loss"])
    assert "logits" not in loss_only
    assert jnp.allclose(l2, ref_loss, atol=1e-3, rtol=1e-3), (
        float(l2), float(ref_loss))

    print("KERNEL_OK")
</pallas_src>

<mosaic_0001>
module attributes {stable_mosaic.version = 11 : i64} {
  func.func @kernel(%arg0: i32, %arg1: i32, %arg2: memref<1x4x256xf32, #tpu.memory_space<vmem>>, %arg3: memref<1x4x256xf32, #tpu.memory_space<vmem>>, %arg4: memref<1x3x256xf32, #tpu.memory_space<vmem>>, %arg5: memref<1x1x256xi32, #tpu.memory_space<vmem>>, %arg6: memref<32x4xf32, #tpu.memory_space<vmem>>, %arg7: memref<32x4xf32, #tpu.memory_space<vmem>>, %arg8: memref<32x3xf32, #tpu.memory_space<vmem>>, %arg9: memref<32x1xf32, #tpu.memory_space<vmem>>, %arg10: memref<4x32xf32, #tpu.memory_space<vmem>>, %arg11: memref<4x1xf32, #tpu.memory_space<vmem>>, %arg12: memref<1x4x256xf32, #tpu.memory_space<vmem>>, %arg13: memref<1x1x2x128xf32, #tpu.memory_space<vmem>>) attributes {dimension_semantics = [#tpu.dimension_semantics<parallel>, #tpu.dimension_semantics<parallel>], iteration_bounds = array<i64: 2, 1>, scalar_prefetch = 0 : i64, scratch_operands = 0 : i64, tpu.core_type = #tpu.core_type<tc>, window_params = [{transform_indices = @transform_0, window_bounds = array<i64: 1, 4, 256>}, {transform_indices = @transform_1, window_bounds = array<i64: 1, 4, 256>}, {transform_indices = @transform_2, window_bounds = array<i64: 1, 3, 256>}, {transform_indices = @transform_3, window_bounds = array<i64: 1, 1, 256>}, {pipeline_mode = #tpu.pipeline_mode<synchronous>, transform_indices = @transform_4, window_bounds = array<i64: 32, 4>}, {pipeline_mode = #tpu.pipeline_mode<synchronous>, transform_indices = @transform_5, window_bounds = array<i64: 32, 4>}, {pipeline_mode = #tpu.pipeline_mode<synchronous>, transform_indices = @transform_6, window_bounds = array<i64: 32, 3>}, {pipeline_mode = #tpu.pipeline_mode<synchronous>, transform_indices = @transform_7, window_bounds = array<i64: 32, 1>}, {pipeline_mode = #tpu.pipeline_mode<synchronous>, transform_indices = @transform_8, window_bounds = array<i64: 4, 32>}, {pipeline_mode = #tpu.pipeline_mode<synchronous>, transform_indices = @transform_9, window_bounds = array<i64: 4, 1>}, {transform_indices = @transform_10, window_bounds = array<i64: 1, 4, 256>}, {transform_indices = @transform_11, window_bounds = array<i64: 1, 1, 2, 128>}]} {
    %c0 = arith.constant 0 : index
    %c0_0 = arith.constant 0 : index
    %c0_1 = arith.constant 0 : index
    %0 = vector.load %arg2[%c0, %c0_0, %c0_1] : memref<1x4x256xf32, #tpu.memory_space<vmem>>, vector<1x4x256xf32>
    %1 = vector.shape_cast %0 : vector<1x4x256xf32> to vector<4x256xf32>
    %c0_2 = arith.constant 0 : index
    %c0_3 = arith.constant 0 : index
    %c0_4 = arith.constant 0 : index
    %2 = vector.load %arg3[%c0_2, %c0_3, %c0_4] : memref<1x4x256xf32, #tpu.memory_space<vmem>>, vector<1x4x256xf32>
    %3 = vector.shape_cast %2 : vector<1x4x256xf32> to vector<4x256xf32>
    %c0_5 = arith.constant 0 : index
    %c0_6 = arith.constant 0 : index
    %c0_7 = arith.constant 0 : index
    %4 = vector.load %arg4[%c0_5, %c0_6, %c0_7] : memref<1x3x256xf32, #tpu.memory_space<vmem>>, vector<1x3x256xf32>
    %5 = vector.shape_cast %4 : vector<1x3x256xf32> to vector<3x256xf32>
    %c0_8 = arith.constant 0 : index
    %c0_9 = arith.constant 0 : index
    %6 = vector.load %arg6[%c0_8, %c0_9] : memref<32x4xf32, #tpu.memory_space<vmem>>, vector<32x4xf32>
    %cst = arith.constant dense<0.000000e+00> : vector<32x256xf32>
    %7 = tpu.matmul %6, %1, %cst {dimension_numbers = #tpu.dot_dimension_numbers<[1], [0], [0], [1], [0, 0, 1, 1], [], []>} : vector<32x4xf32>, vector<4x256xf32>, vector<32x256xf32> -> vector<32x256xf32>
    %c0_10 = arith.constant 0 : index
    %c0_11 = arith.constant 0 : index
    %8 = vector.load %arg7[%c0_10, %c0_11] : memref<32x4xf32, #tpu.memory_space<vmem>>, vector<32x4xf32>
    %cst_12 = arith.constant dense<0.000000e+00> : vector<32x256xf32>
    %9 = tpu.matmul %8, %3, %cst_12 {dimension_numbers = #tpu.dot_dimension_numbers<[1], [0], [0], [1], [0, 0, 1, 1], [], []>} : vector<32x4xf32>, vector<4x256xf32>, vector<32x256xf32> -> vector<32x256xf32>
    %10 = arith.addf %7, %9 : vector<32x256xf32>
    %c0_13 = arith.constant 0 : index
    %c0_14 = arith.constant 0 : index
    %11 = vector.load %arg8[%c0_13, %c0_14] : memref<32x3xf32, #tpu.memory_space<vmem>>, vector<32x3xf32>
    %cst_15 = arith.constant dense<0.000000e+00> : vector<32x256xf32>
    %12 = tpu.matmul %11, %5, %cst_15 {dimension_numbers = #tpu.dot_dimension_numbers<[1], [0], [0], [1], [0, 0, 1, 1], [], []>} : vector<32x3xf32>, vector<3x256xf32>, vector<32x256xf32> -> vector<32x256xf32>
    %13 = arith.addf %10, %12 : vector<32x256xf32>
    %c0_16 = arith.constant 0 : index
    %c0_17 = arith.constant 0 : index
    %14 = vector.load %arg9[%c0_16, %c0_17] : memref<32x1xf32, #tpu.memory_space<vmem>>, vector<32x1xf32>
    %15 = vector.broadcast %14 : vector<32x1xf32> to vector<32x256xf32>
    %16 = arith.addf %13, %15 : vector<32x256xf32>
    %cst_18 = arith.constant 0.000000e+00 : f32
    %17 = vector.broadcast %cst_18 : f32 to vector<32x256xf32>
    %18 = arith.maximumf %16, %17 : vector<32x256xf32>
    %c0_19 = arith.constant 0 : index
    %c0_20 = arith.constant 0 : index
    %19 = vector.load %arg10[%c0_19, %c0_20] : memref<4x32xf32, #tpu.memory_space<vmem>>, vector<4x32xf32>
    %cst_21 = arith.constant dense<0.000000e+00> : vector<4x256xf32>
    %20 = tpu.matmul %19, %18, %cst_21 {dimension_numbers = #tpu.dot_dimension_numbers<[1], [0], [0], [1], [0, 0, 1, 1], [], []>} : vector<4x32xf32>, vector<32x256xf32>, vector<4x256xf32> -> vector<4x256xf32>
    %c0_22 = arith.constant 0 : index
    %c0_23 = arith.constant 0 : index
    %21 = vector.load %arg11[%c0_22, %c0_23] : memref<4x1xf32, #tpu.memory_space<vmem>>, vector<4x1xf32>
    %22 = vector.broadcast %21 : vector<4x1xf32> to vector<4x256xf32>
    %23 = arith.addf %20, %22 : vector<4x256xf32>
    %c0_24 = arith.constant 0 : index
    %c0_25 = arith.constant 0 : index
    %c0_26 = arith.constant 0 : index
    %24 = vector.load %arg12[%c0_24, %c0_25, %c0_26] : memref<1x4x256xf32, #tpu.memory_space<vmem>>, vector<1x4x256xf32>
    %25 = vector.shape_cast %24 : vector<1x4x256xf32> to vector<4x256xf32>
    %26 = vector.shape_cast %23 : vector<4x256xf32> to vector<1x4x256xf32>
    tpu.vector_store %arg12[%c0_24, %c0_25, %c0_26], %26 {strides = array<i32>} : memref<1x4x256xf32, #tpu.memory_space<vmem>>, vector<1x4x256xf32>,
    %c0_27 = arith.constant 0 : index
    %c0_28 = arith.constant 0 : index
    %c0_29 = arith.constant 0 : index
    %27 = vector.load %arg5[%c0_27, %c0_28, %c0_29] : memref<1x1x256xi32, #tpu.memory_space<vmem>>, vector<1x1x256xi32>
    %28 = vector.shape_cast %27 : vector<1x1x256xi32> to vector<1x256xi32>
    %cst_30 = arith.constant dense<0xFF800000> : vector<256xf32>
    %29 = vector.multi_reduction <maximumf>, %23, %cst_30 [0] : vector<4x256xf32> to vector<256xf32>
    %30 = vector.shape_cast %29 : vector<256xf32> to vector<1x256xf32>
    %31 = vector.broadcast %30 : vector<1x256xf32> to vector<4x256xf32>
    %32 = arith.subf %23, %31 : vector<4x256xf32>
    %33 = math.exp %32 : vector<4x256xf32>
    %cst_31 = arith.constant dense<0.000000e+00> : vector<256xf32>
    %34 = vector.multi_reduction <add>, %33, %cst_31 [0] : vector<4x256xf32> to vector<256xf32>
    %35 = vector.shape_cast %34 : vector<256xf32> to vector<1x256xf32>
    %36 = math.log %35 : vector<1x256xf32>
    %37 = arith.addf %30, %36 : vector<1x256xf32>
    %38 = tpu.iota {dimensions = array<i32: 0>} : vector<4x256xi32>
    %39 = vector.broadcast %28 : vector<1x256xi32> to vector<4x256xi32>
    %40 = arith.cmpi eq, %38, %39 : vector<4x256xi32>
    %cst_32 = arith.constant 0.000000e+00 : f32
    %41 = vector.broadcast %cst_32 : f32 to vector<4x256xf32>
    %42 = arith.select %40, %23, %41 : vector<4x256xi1>, vector<4x256xf32>
    %cst_33 = arith.constant dense<0.000000e+00> : vector<256xf32>
    %43 = vector.multi_reduction <add>, %42, %cst_33 [0] : vector<4x256xf32> to vector<256xf32>
    %44 = vector.shape_cast %43 : vector<256xf32> to vector<1x256xf32>
    %c256_i32 = arith.constant 256 : i32
    %45 = arith.muli %arg1, %c256_i32 : i32
    %46 = tpu.iota {dimensions = array<i32: 1>} : vector<1x256xi32>
    %47 = vector.broadcast %45 : i32 to vector<1x256xi32>
    %48 = arith.addi %47, %46 : vector<1x256xi32>
    %c0_i32 = arith.constant 0 : i32
    %49 = vector.broadcast %c0_i32 : i32 to vector<1x256xi32>
    %50 = arith.cmpi sge, %28, %49 : vector<1x256xi32>
    %c256_i32_34 = arith.constant 256 : i32
    %51 = vector.broadcast %c256_i32_34 : i32 to vector<1x256xi32>
    %52 = arith.cmpi slt, %48, %51 : vector<1x256xi32>
    %53 = arith.andi %50, %52 : vector<1x256xi1>
    %54 = arith.subf %37, %44 : vector<1x256xf32>
    %cst_35 = arith.constant 0.000000e+00 : f32
    %55 = vector.broadcast %cst_35 : f32 to vector<1x256xf32>
    %56 = arith.select %53, %54, %55 : vector<1x256xi1>, vector<1x256xf32>
    %57 = vector.shape_cast %56 : vector<1x256xf32> to vector<1x1x256xf32>
    %cst_36 = arith.constant dense<0.000000e+00> : vector<1xf32>
    %58 = vector.multi_reduction <add>, %57, %cst_36 [1, 2] : vector<1x1x256xf32> to vector<1xf32>
    %59 = vector.shape_cast %58 : vector<1xf32> to vector<1x1x1xf32>
    %60 = vector.extract %59[0, 0, 0] : f32 from vector<1x1x1xf32>
    %61 = arith.extui %53 : vector<1x256xi1> to vector<1x256xi32>
    %62 = arith.sitofp %61 : vector<1x256xi32> to vector<1x256xf32>
    %63 = vector.shape_cast %62 : vector<1x256xf32> to vector<1x1x256xf32>
    %cst_37 = arith.constant dense<0.000000e+00> : vector<1xf32>
    %64 = vector.multi_reduction <add>, %63, %cst_37 [1, 2] : vector<1x1x256xf32> to vector<1xf32>
    %65 = vector.shape_cast %64 : vector<1xf32> to vector<1x1x1xf32>
    %66 = vector.extract %65[0, 0, 0] : f32 from vector<1x1x1xf32>
    %67 = tpu.iota {dimensions = array<i32: 0>} : vector<2x128xi32>
    %68 = tpu.iota {dimensions = array<i32: 1>} : vector<2x128xi32>
    %c0_i32_38 = arith.constant 0 : i32
    %69 = vector.broadcast %c0_i32_38 : i32 to vector<2x128xi32>
    %70 = arith.cmpi eq, %67, %69 : vector<2x128xi32>
    %c0_i32_39 = arith.constant 0 : i32
    %71 = vector.broadcast %c0_i32_39 : i32 to vector<2x128xi32>
    %72 = arith.cmpi eq, %68, %71 : vector<2x128xi32>
    %73 = arith.andi %70, %72 : vector<2x128xi1>
    %c1_i32 = arith.constant 1 : i32
    %74 = vector.broadcast %c1_i32 : i32 to vector<2x128xi32>
    %75 = arith.cmpi eq, %67, %74 : vector<2x128xi32>
    %c0_i32_40 = arith.constant 0 : i32
    %76 = vector.broadcast %c0_i32_40 : i32 to vector<2x128xi32>
    %77 = arith.cmpi eq, %68, %76 : vector<2x128xi32>
    %78 = arith.andi %75, %77 : vector<2x128xi1>
    %cst_41 = arith.constant 0.000000e+00 : f32
    %79 = vector.broadcast %66 : f32 to vector<2x128xf32>
    %80 = vector.broadcast %cst_41 : f32 to vector<2x128xf32>
    %81 = arith.select %78, %79, %80 : vector<2x128xi1>, vector<2x128xf32>
    %82 = vector.broadcast %60 : f32 to vector<2x128xf32>
    %83 = arith.select %73, %82, %81 : vector<2x128xi1>, vector<2x128xf32>
    %c0_42 = arith.constant 0 : index
    %c0_43 = arith.constant 0 : index
    %c0_44 = arith.constant 0 : index
    %c0_45 = arith.constant 0 : index
    %84 = vector.load %arg13[%c0_42, %c0_43, %c0_44, %c0_45] : memref<1x1x2x128xf32, #tpu.memory_space<vmem>>, vector<1x1x2x128xf32>
    %85 = vector.shape_cast %84 : vector<1x1x2x128xf32> to vector<2x128xf32>
    %86 = vector.shape_cast %83 : vector<2x128xf32> to vector<1x1x2x128xf32>
    tpu.vector_store %arg13[%c0_42, %c0_43, %c0_44, %c0_45], %86 {strides = array<i32>} : memref<1x1x2x128xf32, #tpu.memory_space<vmem>>, vector<1x1x2x128xf32>,
    return
  }
  func.func @transform_0(%arg0: i32, %arg1: i32) -> (i32, i32, i32) {
    %c0_i32 = arith.constant 0 : i32
    %c0_i32_0 = arith.constant 0 : i32
    return %arg0, %c0_i32, %arg1 : i32, i32, i32
  }
  func.func @transform_1(%arg0: i32, %arg1: i32) -> (i32, i32, i32) {
    %c0_i32 = arith.constant 0 : i32
    %c0_i32_0 = arith.constant 0 : i32
    return %arg0, %c0_i32, %arg1 : i32, i32, i32
  }
  func.func @transform_2(%arg0: i32, %arg1: i32) -> (i32, i32, i32) {
    %c0_i32 = arith.constant 0 : i32
    %c0_i32_0 = arith.constant 0 : i32
    return %arg0, %c0_i32, %arg1 : i32, i32, i32
  }
  func.func @transform_3(%arg0: i32, %arg1: i32) -> (i32, i32, i32) {
    %c0_i32 = arith.constant 0 : i32
    %c0_i32_0 = arith.constant 0 : i32
    return %arg0, %c0_i32, %arg1 : i32, i32, i32
  }
  func.func @transform_4(%arg0: i32, %arg1: i32) -> (i32, i32) {
    %c0_i32 = arith.constant 0 : i32
    %c0_i32_0 = arith.constant 0 : i32
    %c0_i32_1 = arith.constant 0 : i32
    return %c0_i32, %c0_i32_0 : i32, i32
  }
  func.func @transform_5(%arg0: i32, %arg1: i32) -> (i32, i32) {
    %c0_i32 = arith.constant 0 : i32
    %c0_i32_0 = arith.constant 0 : i32
    %c0_i32_1 = arith.constant 0 : i32
    return %c0_i32, %c0_i32_0 : i32, i32
  }
  func.func @transform_6(%arg0: i32, %arg1: i32) -> (i32, i32) {
    %c0_i32 = arith.constant 0 : i32
    %c0_i32_0 = arith.constant 0 : i32
    %c0_i32_1 = arith.constant 0 : i32
    return %c0_i32, %c0_i32_0 : i32, i32
  }
  func.func @transform_7(%arg0: i32, %arg1: i32) -> (i32, i32) {
    %c0_i32 = arith.constant 0 : i32
    %c0_i32_0 = arith.constant 0 : i32
    %c0_i32_1 = arith.constant 0 : i32
    return %c0_i32, %c0_i32_0 : i32, i32
  }
  func.func @transform_8(%arg0: i32, %arg1: i32) -> (i32, i32) {
    %c0_i32 = arith.constant 0 : i32
    %c0_i32_0 = arith.constant 0 : i32
    %c0_i32_1 = arith.constant 0 : i32
    return %c0_i32, %c0_i32_0 : i32, i32
  }
  func.func @transform_9(%arg0: i32, %arg1: i32) -> (i32, i32) {
    %c0_i32 = arith.constant 0 : i32
    %c0_i32_0 = arith.constant 0 : i32
    %c0_i32_1 = arith.constant 0 : i32
    return %c0_i32, %c0_i32_0 : i32, i32
  }
  func.func @transform_10(%arg0: i32, %arg1: i32) -> (i32, i32, i32) {
    %c0_i32 = arith.constant 0 : i32
    %c0_i32_0 = arith.constant 0 : i32
    return %arg0, %c0_i32, %arg1 : i32, i32, i32
  }
  func.func @transform_11(%arg0: i32, %arg1: i32) -> (i32, i32, i32, i32) {
    %c0_i32 = arith.constant 0 : i32
    %c0_i32_0 = arith.constant 0 : i32
    %c0_i32_1 = arith.constant 0 : i32
    return %arg0, %arg1, %c0_i32, %c0_i32_0 : i32, i32, i32, i32
  }
}

</mosaic_0001>

<llo_original>
// kernel: tpu_custom_call.1
$region0: #{tpu_custom_call.1}
  #allocation0 [shape = 'u32[]', space=smem, size = 0x4, offset = 0x4, fixed_abs, tag = 'smem constant byte address 0x4 - core index']
  #allocation1 [shape = 'u32[144,128]{1,0:T(1,128)}', space=vmem, size = 0x12000, scoped, tag = 'internal scratch']
  %s0 = inlined_call_operand.vmem [shape: f32[2,4,256], index: 0, kind: input, shape index: {}]
  %s1 = inlined_call_operand.vmem [shape: f32[2,4,256], index: 1, kind: input, shape index: {}]
  %s2 = inlined_call_operand.vmem [shape: f32[2,3,256], index: 2, kind: input, shape index: {}]
  %s3 = inlined_call_operand.vmem [shape: s32[2,1,256], index: 3, kind: input, shape index: {}]
  %s4 = inlined_call_operand.vmem [shape: f32[32,4], index: 4, kind: input, shape index: {}]
  %s5 = inlined_call_operand.vmem [shape: f32[32,4], index: 5, kind: input, shape index: {}]
  %s6 = inlined_call_operand.vmem [shape: f32[32,3], index: 6, kind: input, shape index: {}]
  %s7 = inlined_call_operand.vmem [shape: f32[32,1], index: 7, kind: input, shape index: {}]
  %s8 = inlined_call_operand.vmem [shape: f32[4,32], index: 8, kind: input, shape index: {}]
  %s9 = inlined_call_operand.vmem [shape: f32[4,1], index: 9, kind: input, shape index: {}]
  %s10 = inlined_call_operand.hbm [shape: f32[2,4,256], index: 10, kind: output, shape index: {0}]
  %s11 = inlined_call_operand.hbm [shape: f32[2,1,2,128], index: 11, kind: output, shape index: {1}]
  %12 = xla_tuple %s10, %s11
  %s13 = sld [smem:[#allocation0]]
  $region81: #{tpu_custom_call.1} parent=0
    _
  %s15 = ssub.s32 1, %s13
  %s16 = scalar_select 0, %s15, %s13
  $region1: #{tpu_custom_call.1} parent=0
    #allocation2 [shape = 'u8[8192]{0}', space=vmem, size = 0x2000, scoped, tag = 'output window, operand 0']
    #allocation3 [shape = 's32[2]{0}', space=sflag, size = 0x8, scoped, tag = 'scoped memory for tpu_custom_call.1']
    #allocation4 [shape = 'u8[2048]{0}', space=vmem, size = 0x800, scoped, tag = 'output window, operand 1']
    #allocation5 [shape = 's32[2]{0}', space=sflag, size = 0x8, scoped, tag = 'scoped memory for tpu_custom_call.1']
    %17 = vsyncpa [#allocation3], 0
    %s18 = scalar_lea.sflag [#allocation3], 1
    %19 = vsyncpa %s18, 0
    %20 = vsyncpa [#allocation5], 0
    %s21 = scalar_lea.sflag [#allocation5], 1
    %22 = vsyncpa %s21, 0
    loop: start=0, step=1, limit=4
    $region2: #{tpu_custom_call.1} parent=1 // loop_pre_header
      _
    $region3: #{tpu_custom_call.1} parent=1 // loop_header
      %s24 = sphi 0, %s28
      %p25 = scmp.ge.s32.totalorder %s24, 4
      %s31 = sphi 0, %s43
      %s32 = sphi 0, %s39
      %s33 = sphi 0, %s31
      %s34 = sphi 0, %s32
      %s35 = sphi 0, %s33
      %s36 = sphi 0, %s34
      %s48 = sphi 0, %s50
      %s51 = sphi 0, %s48
      %s52 = sphi 0, %s51
      %s68 = sphi 0, %s52
      %s76 = sphi 0, %s78
      %s79 = sphi 0, %s76
      %s80 = sphi 0, %s79
      %s96 = sphi 0, %s80
      %s104 = sphi 0, %s106
      %s107 = sphi 0, %s104
      %s108 = sphi 0, %s107
      %s124 = sphi 0, %s108
      %s132 = sphi 0, %s134
      %s135 = sphi 0, %s132
      %s136 = sphi 0, %s135
      %s152 = sphi 0, %s136
      %s156 = sphi 0, %s156
      %s158 = sphi 0, %s156
      %s159 = sphi 0, %s158
      %s173 = sphi 0, %s159
      %s177 = sphi 0, %s177
      %s179 = sphi 0, %s177
      %s180 = sphi 0, %s179
      %s194 = sphi 0, %s180
      %s198 = sphi 0, %s198
      %s200 = sphi 0, %s198
      %s201 = sphi 0, %s200
      %s215 = sphi 0, %s201
      %s219 = sphi 0, %s219
      %s221 = sphi 0, %s219
      %s222 = sphi 0, %s221
      %s236 = sphi 0, %s222
      %s240 = sphi 0, %s240
      %s242 = sphi 0, %s240
      %s243 = sphi 0, %s242
      %s257 = sphi 0, %s243
      %s261 = sphi 0, %s261
      %s263 = sphi 0, %s261
      %s264 = sphi 0, %s263
      %s278 = sphi 0, %s264
      %s286 = sphi 0, %s288
      %s289 = sphi 0, %s286
      %s290 = sphi 0, %s289
      %s306 = sphi 0, %s290
      %s314 = sphi 0, %s316
      %s317 = sphi 0, %s314
      %s318 = sphi 0, %s317
      %s334 = sphi 0, %s318
    $region4: #{tpu_custom_call.1} parent=1 // loop_header_branch
      %27 = sbr.rel (%p25) target = $region8
    $region5: #{tpu_custom_call.1} parent=1 // loop_body
      %s29 = ssub.s32 %s24, 1
      %s30 = ssub.s32 %s24, 2
      %s37 = sadd.s32 1, %s32
      %p38 = scmp.ge.s32.totalorder %s37, 1
      %s39 = scalar_select %p38, 0, %s37
      %s40 = sadd.s32 1, %s31
      %s41 = scalar_select %p38, %s40, %s31
      %p42 = scmp.ge.s32.totalorder %s41, 2
      %s43 = scalar_select %p42, 0, %s41
      %s44 = ssub.s32 %s31, %s43
      %s45 = ssub.s32 %s32, %s39
      %s46 = sor.u32 %s44, %s45
      %p47 = scmp.eq.s32.totalorder %s46, 0
      %s49 = sadd.s32 %s48, 1
      %s50 = scalar_select %p47, %s48, %s49
      %p53 = pneg %p47
      %p54 = scmp.eq.s32.totalorder %s24, 1
      %p55 = por %p53, %p54
      %p56 = scmp.ne.s32.totalorder %s48, %s51
      %p57 = scmp.eq.s32.totalorder %s24, 0
      %p58 = por %p56, %p57
      %p59 = scmp.ne.s32.totalorder %s48, %s51
      %p60 = scmp.eq.s32.totalorder %s29, 1
      %p61 = por %p59, %p60
      %p62 = scmp.ne.s32.totalorder %s51, %s52
      %p63 = scmp.eq.s32.totalorder %s29, 0
      %p64 = por %p62, %p63
      %p65 = scmp.ne.s32.totalorder %s51, %s52
      %p66 = scmp.eq.s32.totalorder %s30, 1
      %p67 = por %p65, %p66
      %p69 = scmp.ne.s32.totalorder %s52, %s68
      %p70 = scmp.eq.s32.totalorder %s30, 0
      %p71 = por %p69, %p70
      %s72 = ssub.s32 %s31, %s43
      %s73 = ssub.s32 %s32, %s39
      %s74 = sor.u32 %s72, %s73
      %p75 = scmp.eq.s32.totalorder %s74, 0
      %s77 = sadd.s32 %s76, 1
      %s78 = scalar_select %p75, %s76, %s77
      %p81 = pneg %p75
      %p82 = scmp.eq.s32.totalorder %s24, 1
      %p83 = por %p81, %p82
      %p84 = scmp.ne.s32.totalorder %s76, %s79
      %p85 = scmp.eq.s32.totalorder %s24, 0
      %p86 = por %p84, %p85
      %p87 = scmp.ne.s32.totalorder %s76, %s79
      %p88 = scmp.eq.s32.totalorder %s29, 1
      %p89 = por %p87, %p88
      %p90 = scmp.ne.s32.totalorder %s79, %s80
      %p91 = scmp.eq.s32.totalorder %s29, 0
      %p92 = por %p90, %p91
      %p93 = scmp.ne.s32.totalorder %s79, %s80
      %p94 = scmp.eq.s32.totalorder %s30, 1
      %p95 = por %p93, %p94
      %p97 = scmp.ne.s32.totalorder %s80, %s96
      %p98 = scmp.eq.s32.totalorder %s30, 0
      %p99 = por %p97, %p98
      %s100 = ssub.s32 %s31, %s43
      %s101 = ssub.s32 %s32, %s39
      %s102 = sor.u32 %s100, %s101
      %p103 = scmp.eq.s32.totalorder %s102, 0
      %s105 = sadd.s32 %s104, 1
      %s106 = scalar_select %p103, %s104, %s105
      %p109 = pneg %p103
      %p110 = scmp.eq.s32.totalorder %s24, 1
      %p111 = por %p109, %p110
      %p112 = scmp.ne.s32.totalorder %s104, %s107
      %p113 = scmp.eq.s32.totalorder %s24, 0
      %p114 = por %p112, %p113
      %p115 = scmp.ne.s32.totalorder %s104, %s107
      %p116 = scmp.eq.s32.totalorder %s29, 1
      %p117 = por %p115, %p116
      %p118 = scmp.ne.s32.totalorder %s107, %s108
      %p119 = scmp.eq.s32.totalorder %s29, 0
      %p120 = por %p118, %p119
      %p121 = scmp.ne.s32.totalorder %s107, %s108
      %p122 = scmp.eq.s32.totalorder %s30, 1
      %p123 = por %p121, %p122
      %p125 = scmp.ne.s32.totalorder %s108, %s124
      %p126 = scmp.eq.s32.totalorder %s30, 0
      %p127 = por %p125, %p126
      %s128 = ssub.s32 %s31, %s43
      %s129 = ssub.s32 %s32, %s39
      %s130 = sor.u32 %s128, %s129
      %p131 = scmp.eq.s32.totalorder %s130, 0
      %s133 = sadd.s32 %s132, 1
      %s134 = scalar_select %p131, %s132, %s133
      %p137 = pneg %p131
      %p138 = scmp.eq.s32.totalorder %s24, 1
      %p139 = por %p137, %p138
      %p140 = scmp.ne.s32.totalorder %s132, %s135
      %p141 = scmp.eq.s32.totalorder %s24, 0
      %p142 = por %p140, %p141
      %p143 = scmp.ne.s32.totalorder %s132, %s135
      %p144 = scmp.eq.s32.totalorder %s29, 1
      %p145 = por %p143, %p144
      %p146 = scmp.ne.s32.totalorder %s135, %s136
      %p147 = scmp.eq.s32.totalorder %s29, 0
      %p148 = por %p146, %p147
      %p149 = scmp.ne.s32.totalorder %s135, %s136
      %p150 = scmp.eq.s32.totalorder %s30, 1
      %p151 = por %p149, %p150
      %p153 = scmp.ne.s32.totalorder %s136, %s152
      %p154 = scmp.eq.s32.totalorder %s30, 0
      %p155 = por %p153, %p154
      %s157 = sadd.s32 %s156, 1
      %p160 = scmp.eq.s32.totalorder %s24, 1
      %p161 = scmp.ne.s32.totalorder %s156, %s158
      %p162 = scmp.eq.s32.totalorder %s24, 0
      %p163 = por %p161, %p162
      %p164 = scmp.ne.s32.totalorder %s156, %s158
      %p165 = scmp.eq.s32.totalorder %s29, 1
      %p166 = por %p164, %p165
      %p167 = scmp.ne.s32.totalorder %s158, %s159
      %p168 = scmp.eq.s32.totalorder %s29, 0
      %p169 = por %p167, %p168
      %p170 = scmp.ne.s32.totalorder %s158, %s159
      %p171 = scmp.eq.s32.totalorder %s30, 1
      %p172 = por %p170, %p171
      %p174 = scmp.ne.s32.totalorder %s159, %s173
      %p175 = scmp.eq.s32.totalorder %s30, 0
      %p176 = por %p174, %p175
      %s178 = sadd.s32 %s177, 1
      %p181 = scmp.eq.s32.totalorder %s24, 1
      %p182 = scmp.ne.s32.totalorder %s177, %s179
      %p183 = scmp.eq.s32.totalorder %s24, 0
      %p184 = por %p182, %p183
      %p185 = scmp.ne.s32.totalorder %s177, %s179
      %p186 = scmp.eq.s32.totalorder %s29, 1
      %p187 = por %p185, %p186
      %p188 = scmp.ne.s32.totalorder %s179, %s180
      %p189 = scmp.eq.s32.totalorder %s29, 0
      %p190 = por %p188, %p189
      %p191 = scmp.ne.s32.totalorder %s179, %s180
      %p192 = scmp.eq.s32.totalorder %s30, 1
      %p193 = por %p191, %p192
      %p195 = scmp.ne.s32.totalorder %s180, %s194
      %p196 = scmp.eq.s32.totalorder %s30, 0
      %p197 = por %p195, %p196
      %s199 = sadd.s32 %s198, 1
      %p202 = scmp.eq.s32.totalorder %s24, 1
      %p203 = scmp.ne.s32.totalorder %s198, %s200
      %p204 = scmp.eq.s32.totalorder %s24, 0
      %p205 = por %p203, %p204
      %p206 = scmp.ne.s32.totalorder %s198, %s200
      %p207 = scmp.eq.s32.totalorder %s29, 1
      %p208 = por %p206, %p207
      %p209 = scmp.ne.s32.totalorder %s200, %s201
      %p210 = scmp.eq.s32.totalorder %s29, 0
      %p211 = por %p209, %p210
      %p212 = scmp.ne.s32.totalorder %s200, %s201
      %p213 = scmp.eq.s32.totalorder %s30, 1
      %p214 = por %p212, %p213
      %p216 = scmp.ne.s32.totalorder %s201, %s215
      %p217 = scmp.eq.s32.totalorder %s30, 0
      %p218 = por %p216, %p217
      %s220 = sadd.s32 %s219, 1
      %p223 = scmp.eq.s32.totalorder %s24, 1
      %p224 = scmp.ne.s32.totalorder %s219, %s221
      %p225 = scmp.eq.s32.totalorder %s24, 0
      %p226 = por %p224, %p225
      %p227 = scmp.ne.s32.totalorder %s219, %s221
      %p228 = scmp.eq.s32.totalorder %s29, 1
      %p229 = por %p227, %p228
      %p230 = scmp.ne.s32.totalorder %s221, %s222
      %p231 = scmp.eq.s32.totalorder %s29, 0
      %p232 = por %p230, %p231
      %p233 = scmp.ne.s32.totalorder %s221, %s222
      %p234 = scmp.eq.s32.totalorder %s30, 1
      %p235 = por %p233, %p234
      %p237 = scmp.ne.s32.totalorder %s222, %s236
      %p238 = scmp.eq.s32.totalorder %s30, 0
      %p239 = por %p237, %p238
      %s241 = sadd.s32 %s240, 1
      %p244 = scmp.eq.s32.totalorder %s24, 1
      %p245 = scmp.ne.s32.totalorder %s240, %s242
      %p246 = scmp.eq.s32.totalorder %s24, 0
      %p247 = por %p245, %p246
      %p248 = scmp.ne.s32.totalorder %s240, %s242
      %p249 = scmp.eq.s32.totalorder %s29, 1
      %p250 = por %p248, %p249
      %p251 = scmp.ne.s32.totalorder %s242, %s243
      %p252 = scmp.eq.s32.totalorder %s29, 0
      %p253 = por %p251, %p252
      %p254 = scmp.ne.s32.totalorder %s242, %s243
      %p255 = scmp.eq.s32.totalorder %s30, 1
      %p256 = por %p254, %p255
      %p258 = scmp.ne.s32.totalorder %s243, %s257
      %p259 = scmp.eq.s32.totalorder %s30, 0
      %p260 = por %p258, %p259
      %s262 = sadd.s32 %s261, 1
      %p265 = scmp.eq.s32.totalorder %s24, 1
      %p266 = scmp.ne.s32.totalorder %s261, %s263
      %p267 = scmp.eq.s32.totalorder %s24, 0
      %p268 = por %p266, %p267
      %p269 = scmp.ne.s32.totalorder %s261, %s263
      %p270 = scmp.eq.s32.totalorder %s29, 1
      %p271 = por %p269, %p270
      %p272 = scmp.ne.s32.totalorder %s263, %s264
      %p273 = scmp.eq.s32.totalorder %s29, 0
      %p274 = por %p272, %p273
      %p275 = scmp.ne.s32.totalorder %s263, %s264
      %p276 = scmp.eq.s32.totalorder %s30, 1
      %p277 = por %p275, %p276
      %p279 = scmp.ne.s32.totalorder %s264, %s278
      %p280 = scmp.eq.s32.totalorder %s30, 0
      %p281 = por %p279, %p280
      %s282 = ssub.s32 %s31, %s43
      %s283 = ssub.s32 %s32, %s39
      %s284 = sor.u32 %s282, %s283
      %p285 = scmp.eq.s32.totalorder %s284, 0
      %s287 = sadd.s32 %s286, 1
      %s288 = scalar_select %p285, %s286, %s287
      %p291 = pneg %p285
      %p292 = scmp.eq.s32.totalorder %s24, 1
      %p293 = por %p291, %p292
      %p294 = scmp.ne.s32.totalorder %s286, %s289
      %p295 = scmp.eq.s32.totalorder %s24, 0
      %p296 = por %p294, %p295
      %p297 = scmp.ne.s32.totalorder %s286, %s289
      %p298 = scmp.eq.s32.totalorder %s29, 1
      %p299 = por %p297, %p298
      %p300 = scmp.ne.s32.totalorder %s289, %s290
      %p301 = scmp.eq.s32.totalorder %s29, 0
      %p302 = por %p300, %p301
      %p303 = scmp.ne.s32.totalorder %s289, %s290
      %p304 = scmp.eq.s32.totalorder %s30, 1
      %p305 = por %p303, %p304
      %p307 = scmp.ne.s32.totalorder %s290, %s306
      %p308 = scmp.eq.s32.totalorder %s30, 0
      %p309 = por %p307, %p308
      %s310 = ssub.s32 %s31, %s43
      %s311 = ssub.s32 %s32, %s39
      %s312 = sor.u32 %s310, %s311
      %p313 = scmp.eq.s32.totalorder %s312, 0
      %s315 = sadd.s32 %s314, 1
      %s316 = scalar_select %p313, %s314, %s315
      %p319 = pneg %p313
      %p320 = scmp.eq.s32.totalorder %s24, 1
      %p321 = por %p319, %p320
      %p322 = scmp.ne.s32.totalorder %s314, %s317
      %p323 = scmp.eq.s32.totalorder %s24, 0
      %p324 = por %p322, %p323
      %p325 = scmp.ne.s32.totalorder %s314, %s317
      %p326 = scmp.eq.s32.totalorder %s29, 1
      %p327 = por %p325, %p326
      %p328 = scmp.ne.s32.totalorder %s317, %s318
      %p329 = scmp.eq.s32.totalorder %s29, 0
      %p330 = por %p328, %p329
      %p331 = scmp.ne.s32.totalorder %s317, %s318
      %p332 = scmp.eq.s32.totalorder %s30, 1
      %p333 = por %p331, %p332
      %p335 = scmp.ne.s32.totalorder %s318, %s334
      %p336 = scmp.eq.s32.totalorder %s30, 0
      %p337 = por %p335, %p336
      %p338 = scmp.le.s32.totalorder 1, %s24
      %p339 = scmp.lt.s32.totalorder %s24, 3
      %p340 = pnand %p338, %p339
      %p341 = pneg %p340
      // Predicated region
      $region9: #{tpu_custom_call.1} parent=5 // pred_check
        _
      $region10: #{tpu_custom_call.1} parent=5 // pred_check_branch
        %343 = sbr.rel (%p340) target = $region12
      $region11: #{tpu_custom_call.1} parent=5 // pred_region
        %s344 = ssub.s32 %s24, 1
        // Predicated region
        $region13: #{tpu_custom_call.1} parent=11 // pred_check
          %p345 = pneg %p169
        $region14: #{tpu_custom_call.1} parent=11 // pred_check_branch
          %347 = sbr.rel (%p345) target = $region16
        $region15: #{tpu_custom_call.1} parent=11 // pred_region
          _
        $region16: #{tpu_custom_call.1} parent=11 // pred_fallthru
          _
        // Predicated region
        $region17: #{tpu_custom_call.1} parent=11 // pred_check
          %p348 = pneg %p190
        $region18: #{tpu_custom_call.1} parent=11 // pred_check_branch
          %350 = sbr.rel (%p348) target = $region20
        $region19: #{tpu_custom_call.1} parent=11 // pred_region
          _
        $region20: #{tpu_custom_call.1} parent=11 // pred_fallthru
          _
        // Predicated region
        $region21: #{tpu_custom_call.1} parent=11 // pred_check
          %p351 = pneg %p211
        $region22: #{tpu_custom_call.1} parent=11 // pred_check_branch
          %353 = sbr.rel (%p351) target = $region24
        $region23: #{tpu_custom_call.1} parent=11 // pred_region
          _
        $region24: #{tpu_custom_call.1} parent=11 // pred_fallthru
          _
        // Predicated region
        $region25: #{tpu_custom_call.1} parent=11 // pred_check
          %p354 = pneg %p232
        $region26: #{tpu_custom_call.1} parent=11 // pred_check_branch
          %356 = sbr.rel (%p354) target = $region28
        $region27: #{tpu_custom_call.1} parent=11 // pred_region
          _
        $region28: #{tpu_custom_call.1} parent=11 // pred_fallthru
          _
        // Predicated region
        $region29: #{tpu_custom_call.1} parent=11 // pred_check
          %p357 = pneg %p253
        $region30: #{tpu_custom_call.1} parent=11 // pred_check_branch
          %359 = sbr.rel (%p357) target = $region32
        $region31: #{tpu_custom_call.1} parent=11 // pred_region
          _
        $region32: #{tpu_custom_call.1} parent=11 // pred_fallthru
          _
        // Predicated region
        $region33: #{tpu_custom_call.1} parent=11 // pred_check
          %p360 = pneg %p274
        $region34: #{tpu_custom_call.1} parent=11 // pred_check_branch
          %362 = sbr.rel (%p360) target = $region36
        $region35: #{tpu_custom_call.1} parent=11 // pred_region
          _
        $region36: #{tpu_custom_call.1} parent=11 // pred_fallthru
          _
      $region12: #{tpu_custom_call.1} parent=5 // pred_fallthru
        _
      %p363 = scmp.lt.s32.totalorder %s24, 2
      // Predicated region
      $region37: #{tpu_custom_call.1} parent=5 // pred_check
        %p364 = pneg %p363
      $region38: #{tpu_custom_call.1} parent=5 // pred_check_branch
        %366 = sbr.rel (%p364) target = $region40
      $region39: #{tpu_custom_call.1} parent=5 // pred_region
        // Predicated region
        $region41: #{tpu_custom_call.1} parent=39 // pred_check
          %p367 = pneg %p58
        $region42: #{tpu_custom_call.1} parent=39 // pred_check_branch
          %369 = sbr.rel (%p367) target = $region44
        $region43: #{tpu_custom_call.1} parent=39 // pred_region
          %s370 = smul.u32 2, %s32
          %p371 = scmp.lt.s32.totalorder %s31, 1
          %s372 = scalar_select %p371, %s31, 1
          %p373 = scmp.lt.s32.totalorder %s370, 1
          %s374 = scalar_select %p373, %s370, 1
          %s375 = smul.addr %s372, 2
          %s376 = sadd.s32 %s374, %s375
          %s377 = smul.addr %s376, 4
          %s378 = scalar_lea.vmem %s0, %s377
          %s379 = smul.u32 2, %s32
        $region44: #{tpu_custom_call.1} parent=39 // pred_fallthru
          _
        // Predicated region
        $region45: #{tpu_custom_call.1} parent=39 // pred_check
          %p380 = pneg %p86
        $region46: #{tpu_custom_call.1} parent=39 // pred_check_branch
          %382 = sbr.rel (%p380) target = $region48
        $region47: #{tpu_custom_call.1} parent=39 // pred_region
          %s383 = smul.u32 2, %s32
          %p384 = scmp.lt.s32.totalorder %s31, 1
          %s385 = scalar_select %p384, %s31, 1
          %p386 = scmp.lt.s32.totalorder %s383, 1
          %s387 = scalar_select %p386, %s383, 1
          %s388 = smul.addr %s385, 2
          %s389 = sadd.s32 %s387, %s388
          %s390 = smul.addr %s389, 4
          %s391 = scalar_lea.vmem %s1, %s390
          %s392 = smul.u32 2, %s32
        $region48: #{tpu_custom_call.1} parent=39 // pred_fallthru
          _
        // Predicated region
        $region49: #{tpu_custom_call.1} parent=39 // pred_check
          %p393 = pneg %p114
        $region50: #{tpu_custom_call.1} parent=39 // pred_check_branch
          %395 = sbr.rel (%p393) target = $region52
        $region51: #{tpu_custom_call.1} parent=39 // pred_region
          %s396 = smul.u32 2, %s32
          %p397 = scmp.lt.s32.totalorder %s31, 1
          %s398 = scalar_select %p397, %s31, 1
          %p399 = scmp.lt.s32.totalorder %s396, 1
          %s400 = scalar_select %p399, %s396, 1
          %s401 = smul.addr %s398, 2
          %s402 = sadd.s32 %s400, %s401
          %s403 = smul.addr %s402, 4
          %s404 = scalar_lea.vmem %s2, %s403
          %s405 = smul.u32 2, %s32
        $region52: #{tpu_custom_call.1} parent=39 // pred_fallthru
          _
        // Predicated region
        $region53: #{tpu_custom_call.1} parent=39 // pred_check
          %p406 = pneg %p142
        $region54: #{tpu_custom_call.1} parent=39 // pred_check_branch
          %408 = sbr.rel (%p406) target = $region56
        $region55: #{tpu_custom_call.1} parent=39 // pred_region
          %s409 = smul.u32 2, %s32
          %p410 = scmp.lt.s32.totalorder %s31, 1
          %s411 = scalar_select %p410, %s31, 1
          %p412 = scmp.lt.s32.totalorder %s409, 1
          %s413 = scalar_select %p412, %s409, 1
          %s414 = smul.addr %s411, 2
          %s415 = sadd.s32 %s413, %s414
          %s416 = scalar_lea.vmem %s3, %s415
          %s417 = smul.u32 2, %s32
        $region56: #{tpu_custom_call.1} parent=39 // pred_fallthru
          _
      $region40: #{tpu_custom_call.1} parent=5 // pred_fallthru
        _
      %p418 = scmp.le.s32.totalorder 1, %s24
      %p419 = scmp.lt.s32.totalorder %s24, 3
      %p420 = pnand %p418, %p419
      %p421 = pneg %p420
      // Predicated region
      $region57: #{tpu_custom_call.1} parent=5 // pred_check
        _
      $region58: #{tpu_custom_call.1} parent=5 // pred_check_branch
        %423 = sbr.rel (%p420) target = $region60
      $region59: #{tpu_custom_call.1} parent=5 // pred_region
        %s424 = ssub.s32 %s24, 1
        %s425 = smul.u32 2, %s34
        %p426 = scmp.lt.s32.totalorder %s33, 1
        %s427 = scalar_select %p426, %s33, 1
        %p428 = scmp.lt.s32.totalorder %s425, 1
        %s429 = scalar_select %p428, %s425, 1
        %s430 = smul.addr %s427, 2
        %s431 = sadd.s32 %s429, %s430
        %s432 = smul.addr %s431, 4
        %s433 = scalar_lea.vmem %s0, %s432
        %p434 = pneg %p64
        %p435 = pneg %p61
        %s436 = smul.u32 2, %s34
        %p437 = scmp.lt.s32.totalorder %s33, 1
        %s438 = scalar_select %p437, %s33, 1
        %p439 = scmp.lt.s32.totalorder %s436, 1
        %s440 = scalar_select %p439, %s436, 1
        %s441 = smul.addr %s438, 2
        %s442 = sadd.s32 %s440, %s441
        %s443 = smul.addr %s442, 4
        %s444 = scalar_lea.vmem %s1, %s443
        %p445 = pneg %p92
        %p446 = pneg %p89
        %s447 = smul.u32 2, %s34
        %p448 = scmp.lt.s32.totalorder %s33, 1
        %s449 = scalar_select %p448, %s33, 1
        %p450 = scmp.lt.s32.totalorder %s447, 1
        %s451 = scalar_select %p450, %s447, 1
        %s452 = smul.addr %s449, 2
        %s453 = sadd.s32 %s451, %s452
        %s454 = smul.addr %s453, 4
        %s455 = scalar_lea.vmem %s2, %s454
        %p456 = pneg %p120
        %p457 = pneg %p117
        %s458 = smul.u32 2, %s34
        %p459 = scmp.lt.s32.totalorder %s33, 1
        %s460 = scalar_select %p459, %s33, 1
        %p461 = scmp.lt.s32.totalorder %s458, 1
        %s462 = scalar_select %p461, %s458, 1
        %s463 = smul.addr %s460, 2
        %s464 = sadd.s32 %s462, %s463
        %s465 = scalar_lea.vmem %s3, %s464
        %p466 = pneg %p148
        %p467 = pneg %p145
        %p468 = pneg %p169
        %p469 = pneg %p166
        %p470 = pneg %p190
        %p471 = pneg %p187
        %p472 = pneg %p211
        %p473 = pneg %p208
        %p474 = pneg %p232
        %p475 = pneg %p229
        %p476 = pneg %p253
        %p477 = pneg %p250
        %p478 = pneg %p274
        %p479 = pneg %p271
        %p480 = pneg %p302
        %p481 = pneg %p299
        %s482 = sand.u32 %s289, 1
        %s483 = scalar_lea.sflag [#allocation3], %s482
        %s484 = sand.u32 %s289, 1
        %s485 = smul.addr %s484, 8
        %s486 = scalar_lea.vmem [#allocation2], %s485
        %p487 = pneg %p330
        %p488 = pneg %p327
        %s489 = sand.u32 %s317, 1
        %s490 = scalar_lea.sflag [#allocation5], %s489
        %s491 = sand.u32 %s317, 1
        %s492 = smul.addr %s491, 2
        %s493 = scalar_lea.vmem [#allocation4], %s492
        %s494 = smul.u32 2, %s34
        %p495 = scmp.lt.s32.totalorder %s33, 1
        %s496 = scalar_select %p495, %s33, 1
        %p497 = scmp.lt.s32.totalorder %s494, 1
        %s498 = scalar_select %p497, %s494, 1
        %s499 = smul.addr %s496, 2
        %s500 = sadd.s32 %s498, %s499
        %s501 = smul.addr %s500, 4
        %s502 = scalar_lea.vmem %s0, %s501
        %s503 = smul.u32 2, %s34
        %s504 = smul.u32 2, %s34
        %p505 = scmp.lt.s32.totalorder %s33, 1
        %s506 = scalar_select %p505, %s33, 1
        %p507 = scmp.lt.s32.totalorder %s504, 1
        %s508 = scalar_select %p507, %s504, 1
        %s509 = smul.addr %s506, 2
        %s510 = sadd.s32 %s508, %s509
        %s511 = smul.addr %s510, 4
        %s512 = scalar_lea.vmem %s1, %s511
        %s513 = smul.u32 2, %s34
        %s514 = smul.u32 2, %s34
        %p515 = scmp.lt.s32.totalorder %s33, 1
        %s516 = scalar_select %p515, %s33, 1
        %p517 = scmp.lt.s32.totalorder %s514, 1
        %s518 = scalar_select %p517, %s514, 1
        %s519 = smul.addr %s516, 2
        %s520 = sadd.s32 %s518, %s519
        %s521 = smul.addr %s520, 4
        %s522 = scalar_lea.vmem %s2, %s521
        %s523 = smul.u32 2, %s34
        %s524 = smul.u32 2, %s34
        %p525 = scmp.lt.s32.totalorder %s33, 1
        %s526 = scalar_select %p525, %s33, 1
        %p527 = scmp.lt.s32.totalorder %s524, 1
        %s528 = scalar_select %p527, %s524, 1
        %s529 = smul.addr %s526, 2
        %s530 = sadd.s32 %s528, %s529
        %s531 = scalar_lea.vmem %s3, %s530
        %s532 = smul.u32 2, %s34
        %s533 = smul.u32 2, %s34
        %v534 = vld [vmem:[%s502] sm:$0xff]
        %v535 = vld [vmem:[%s512] sm:$0xff]
        %v536 = vld [vmem:[%s522] sm:$0x77]
        %v537 = vld [vmem:[%s4] sm:$0xff]
        %v538 = vld [vmem:[%s4 + $0x8] sm:$0xff]
        %v539 = vld [vmem:[%s4 + $0x10] sm:$0xff]
        %v540 = vld [vmem:[%s4 + $0x18] sm:$0xff]
        %v541 = vld [vmem:[%s5] sm:$0xff]
        %v542 = vld [vmem:[%s5 + $0x8] sm:$0xff]
        %v543 = vld [vmem:[%s5 + $0x10] sm:$0xff]
        %v544 = vld [vmem:[%s5 + $0x18] sm:$0xff]
        %v546 = vcombine.high %v535, %v535
        %vm547 = vcmask 31744
        %v549 = vsel %vm547, %v541, 0
        %v552 = vsel %vm547, %v542, 0
        %v555 = vsel %vm547, %v543, 0
        %v558 = vsel %vm547, %v544, 0
        %vm560 = vcmask 1043456
        %v561 = vsel %vm560, %v535, 0
        %v563 = vsel %vm560, %v546, 0
        %565 = vmatprep.subr.mxu0 %v563
        %566 = vmatpush1.msra.mxu0 %v561
        %567 = vmatprep.subr.mxu0 0.0
        %568 = vmatpush1.msra.mxu0 0.0
        %569 = vmatprep.subr.mxu0 0.0
        %570 = vmatpush1.msra.mxu0 0.0
        %571 = vmatprep.subr.mxu0 0.0
        %572 = vmatpush1.msra.mxu0 0.0
        %573 = vmatprep.subr.mxu0 0.0
        %574 = vmatpush1.msra.mxu0 0.0
        %575 = vmatprep.subr.mxu0 0.0
        %576 = vmatpush1.msra.mxu0 0.0
        %577 = vmatprep.subr.mxu0 0.0
        %578 = vmatpush1.msra.mxu0 0.0
        %579 = vmatprep.subr.mxu0 0.0
        %580 = vmatpush1.msra.mxu0 0.0
        %581 = vmatprep.subr.mxu0 0.0
        %582 = vmatpush1.msra.mxu0 0.0
        %583 = vmatprep.subr.mxu0 0.0
        %584 = vmatpush1.msra.mxu0 0.0
        %585 = vmatprep.subr.mxu0 0.0
        %586 = vmatpush1.msra.mxu0 0.0
        %587 = vmatprep.subr.mxu0 0.0
        %588 = vmatpush1.msra.mxu0 0.0
        %589 = vmatprep.subr.mxu0 0.0
        %590 = vmatpush1.msra.mxu0 0.0
        %591 = vmatprep.subr.mxu0 0.0
        %592 = vmatpush1.msra.mxu0 0.0
        %593 = vmatprep.subr.mxu0 0.0
        %594 = vmatpush1.msra.mxu0 0.0
        %595 = vmatprep.subr.mxu0 0.0
        %596 = vmatpush1.msra.mxu0 0.0
        %597 = vmatprep.subr.mxu0 0.0
        %598 = vmatpush1.msra.mxu0 0.0
        %599 = vmatprep.subr.mxu0 0.0
        %600 = vmatpush1.msra.mxu0 0.0
        %601 = vmatprep.subr.mxu0 0.0
        %602 = vmatpush1.msra.mxu0 0.0
        %603 = vmatprep.subr.mxu0 0.0
        %604 = vmatpush1.msra.mxu0 0.0
        %605 = vmatprep.subr.mxu0 0.0
        %606 = vmatpush1.msra.mxu0 0.0
        %607 = vmatprep.subr.mxu0 0.0
        %608 = vmatpush1.msra.mxu0 0.0
        %609 = vmatprep.subr.mxu0 0.0
        %610 = vmatpush1.msra.mxu0 0.0
        %611 = vmatprep.subr.mxu0 0.0
        %612 = vmatpush1.msra.mxu0 0.0
        %613 = vmatprep.subr.mxu0 0.0
        %614 = vmatpush1.msra.mxu0 0.0
        %615 = vmatprep.subr.mxu0 0.0
        %616 = vmatpush1.msra.mxu0 0.0
        %617 = vmatprep.subr.mxu0 0.0
        %618 = vmatpush1.msra.mxu0 0.0
        %619 = vmatprep.subr.mxu0 0.0
        %620 = vmatpush1.msra.mxu0 0.0
        %621 = vmatprep.subr.mxu0 0.0
        %622 = vmatpush1.msra.mxu0 0.0
        %623 = vmatprep.subr.mxu0 0.0
        %624 = vmatpush1.msra.mxu0 0.0
        %625 = vmatprep.subr.mxu0 0.0
        %626 = vmatpush1.msra.mxu0 0.0
        %627 = vmatprep.subr.mxu0 0.0
        %628 = vmatpush1.msra.mxu0 0.0
        %629 = vmatprep.mubr.f32.mxu0 0.0
        %630 = vmatmul.mubr.f32.gmra.mrb[0].mxu0 %v549
        %v631 = vpop.f32.mrb[0].mxu0
        %v632 = vadd.f32 0.0, %v631
        %v633 = vpop.f32.mrb[0].mxu0
        %v634 = vadd.f32 0.0, %v633
        %635 = vmatprep.mubr.f32.mxu0 0.0
        %636 = vmatmul.mubr.f32.gmra.mrb[0].mxu0 %v552
        %v637 = vpop.f32.mrb[0].mxu0
        %v638 = vadd.f32 0.0, %v637
        %v639 = vpop.f32.mrb[0].mxu0
        %v640 = vadd.f32 0.0, %v639
        %641 = vmatprep.mubr.f32.mxu0 0.0
        %642 = vmatmul.mubr.f32.gmra.mrb[0].mxu0 %v555
        %v643 = vpop.f32.mrb[0].mxu0
        %v644 = vadd.f32 0.0, %v643
        %v645 = vpop.f32.mrb[0].mxu0
        %v646 = vadd.f32 0.0, %v645
        %647 = vmatprep.mubr.f32.mxu0 0.0
        %648 = vmatmul.mubr.f32.gmra.mrb[0].mxu0 %v558
        %v649 = vpop.f32.mrb[0].mxu0
        %v650 = vadd.f32 0.0, %v649
        %v651 = vpop.f32.mrb[0].mxu0
        %v652 = vadd.f32 0.0, %v651
        %653 = vdwg.mxu0
        %v655 = vcombine.high %v534, %v534
        %v657 = vsel %vm547, %v537, 0
        %v660 = vsel %vm547, %v538, 0
        %v663 = vsel %vm547, %v539, 0
        %v666 = vsel %vm547, %v540, 0
        %v668 = vsel %vm560, %v534, 0
        %v670 = vsel %vm560, %v655, 0
        %672 = vmatprep.subr.mxu0 %v670
        %673 = vmatpush1.msra.mxu0 %v668
        %674 = vmatprep.subr.mxu0 0.0
        %675 = vmatpush1.msra.mxu0 0.0
        %676 = vmatprep.subr.mxu0 0.0
        %677 = vmatpush1.msra.mxu0 0.0
        %678 = vmatprep.subr.mxu0 0.0
        %679 = vmatpush1.msra.mxu0 0.0
        %680 = vmatprep.subr.mxu0 0.0
        %681 = vmatpush1.msra.mxu0 0.0
        %682 = vmatprep.subr.mxu0 0.0
        %683 = vmatpush1.msra.mxu0 0.0
        %684 = vmatprep.subr.mxu0 0.0
        %685 = vmatpush1.msra.mxu0 0.0
        %686 = vmatprep.subr.mxu0 0.0
        %687 = vmatpush1.msra.mxu0 0.0
        %688 = vmatprep.subr.mxu0 0.0
        %689 = vmatpush1.msra.mxu0 0.0
        %690 = vmatprep.subr.mxu0 0.0
        %691 = vmatpush1.msra.mxu0 0.0
        %692 = vmatprep.subr.mxu0 0.0
        %693 = vmatpush1.msra.mxu0 0.0
        %694 = vmatprep.subr.mxu0 0.0
        %695 = vmatpush1.msra.mxu0 0.0
        %696 = vmatprep.subr.mxu0 0.0
        %697 = vmatpush1.msra.mxu0 0.0
        %698 = vmatprep.subr.mxu0 0.0
        %699 = vmatpush1.msra.mxu0 0.0
        %700 = vmatprep.subr.mxu0 0.0
        %701 = vmatpush1.msra.mxu0 0.0
        %702 = vmatprep.subr.mxu0 0.0
        %703 = vmatpush1.msra.mxu0 0.0
        %704 = vmatprep.subr.mxu0 0.0
        %705 = vmatpush1.msra.mxu0 0.0
        %706 = vmatprep.subr.mxu0 0.0
        %707 = vmatpush1.msra.mxu0 0.0
        %708 = vmatprep.subr.mxu0 0.0
        %709 = vmatpush1.msra.mxu0 0.0
        %710 = vmatprep.subr.mxu0 0.0
        %711 = vmatpush1.msra.mxu0 0.0
        %712 = vmatprep.subr.mxu0 0.0
        %713 = vmatpush1.msra.mxu0 0.0
        %714 = vmatprep.subr.mxu0 0.0
        %715 = vmatpush1.msra.mxu0 0.0
        %716 = vmatprep.subr.mxu0 0.0
        %717 = vmatpush1.msra.mxu0 0.0
        %718 = vmatprep.subr.mxu0 0.0
        %719 = vmatpush1.msra.mxu0 0.0
        %720 = vmatprep.subr.mxu0 0.0
        %721 = vmatpush1.msra.mxu0 0.0
        %722 = vmatprep.subr.mxu0 0.0
        %723 = vmatpush1.msra.mxu0 0.0
        %724 = vmatprep.subr.mxu0 0.0
        %725 = vmatpush1.msra.mxu0 0.0
        %726 = vmatprep.subr.mxu0 0.0
        %727 = vmatpush1.msra.mxu0 0.0
        %728 = vmatprep.subr.mxu0 0.0
        %729 = vmatpush1.msra.mxu0 0.0
        %730 = vmatprep.subr.mxu0 0.0
        %731 = vmatpush1.msra.mxu0 0.0
        %732 = vmatprep.subr.mxu0 0.0
        %733 = vmatpush1.msra.mxu0 0.0
        %734 = vmatprep.subr.mxu0 0.0
        %735 = vmatpush1.msra.mxu0 0.0
        %736 = vmatprep.mubr.f32.mxu0 0.0
        %737 = vmatmul.mubr.f32.gmra.mrb[0].mxu0 %v657
        %v738 = vpop.f32.mrb[0].mxu0
        %v739 = vadd.f32 %v632, %v738
        %v740 = vpop.f32.mrb[0].mxu0
        %v741 = vadd.f32 %v634, %v740
        %742 = vmatprep.mubr.f32.mxu0 0.0
        %743 = vmatmul.mubr.f32.gmra.mrb[0].mxu0 %v660
        %v744 = vpop.f32.mrb[0].mxu0
        %v745 = vadd.f32 %v638, %v744
        %v746 = vpop.f32.mrb[0].mxu0
        %v747 = vadd.f32 %v640, %v746
        %748 = vmatprep.mubr.f32.mxu0 0.0
        %749 = vmatmul.mubr.f32.gmra.mrb[0].mxu0 %v663
        %v750 = vpop.f32.mrb[0].mxu0
        %v751 = vadd.f32 %v644, %v750
        %v752 = vpop.f32.mrb[0].mxu0
        %v753 = vadd.f32 %v646, %v752
        %754 = vmatprep.mubr.f32.mxu0 0.0
        %755 = vmatmul.mubr.f32.gmra.mrb[0].mxu0 %v666
        %v756 = vpop.f32.mrb[0].mxu0
        %v757 = vadd.f32 %v650, %v756
        %v758 = vpop.f32.mrb[0].mxu0
        %v759 = vadd.f32 %v652, %v758
        %760 = vdwg.mxu0
        %v761 = vld [vmem:[%s6] sm:$0xff]
        %v762 = vld [vmem:[%s6 + $0x8] sm:$0xff]
        %v763 = vld [vmem:[%s6 + $0x10] sm:$0xff]
        %v764 = vld [vmem:[%s6 + $0x18] sm:$0xff]
        %v766 = vcombine.high %v536, %v536
        %vm767 = vcmask 23552
        %v769 = vsel %vm767, %v761, 0
        %v772 = vsel %vm767, %v762, 0
        %v775 = vsel %vm767, %v763, 0
        %v778 = vsel %vm767, %v764, 0
        %vm780 = vcmask 1042432
        %v781 = vsel %vm780, %v536, 0
        %v783 = vsel %vm780, %v766, 0
        %785 = vmatprep.subr.mxu0 %v783
        %786 = vmatpush1.msra.mxu0 %v781
        %787 = vmatprep.subr.mxu0 0.0
        %788 = vmatpush1.msra.mxu0 0.0
        %789 = vmatprep.subr.mxu0 0.0
        %790 = vmatpush1.msra.mxu0 0.0
        %791 = vmatprep.subr.mxu0 0.0
        %792 = vmatpush1.msra.mxu0 0.0
        %793 = vmatprep.subr.mxu0 0.0
        %794 = vmatpush1.msra.mxu0 0.0
        %795 = vmatprep.subr.mxu0 0.0
        %796 = vmatpush1.msra.mxu0 0.0
        %797 = vmatprep.subr.mxu0 0.0
        %798 = vmatpush1.msra.mxu0 0.0
        %799 = vmatprep.subr.mxu0 0.0
        %800 = vmatpush1.msra.mxu0 0.0
        %801 = vmatprep.subr.mxu0 0.0
        %802 = vmatpush1.msra.mxu0 0.0
        %803 = vmatprep.subr.mxu0 0.0
        %804 = vmatpush1.msra.mxu0 0.0
        %805 = vmatprep.subr.mxu0 0.0
        %806 = vmatpush1.msra.mxu0 0.0
        %807 = vmatprep.subr.mxu0 0.0
        %808 = vmatpush1.msra.mxu0 0.0
        %809 = vmatprep.subr.mxu0 0.0
        %810 = vmatpush1.msra.mxu0 0.0
        %811 = vmatprep.subr.mxu0 0.0
        %812 = vmatpush1.msra.mxu0 0.0
        %813 = vmatprep.subr.mxu0 0.0
        %814 = vmatpush1.msra.mxu0 0.0
        %815 = vmatprep.subr.mxu0 0.0
        %816 = vmatpush1.msra.mxu0 0.0
        %817 = vmatprep.subr.mxu0 0.0
        %818 = vmatpush1.msra.mxu0 0.0
        %819 = vmatprep.subr.mxu0 0.0
        %820 = vmatpush1.msra.mxu0 0.0
        %821 = vmatprep.subr.mxu0 0.0
        %822 = vmatpush1.msra.mxu0 0.0
        %823 = vmatprep.subr.mxu0 0.0
        %824 = vmatpush1.msra.mxu0 0.0
        %825 = vmatprep.subr.mxu0 0.0
        %826 = vmatpush1.msra.mxu0 0.0
        %827 = vmatprep.subr.mxu0 0.0
        %828 = vmatpush1.msra.mxu0 0.0
        %829 = vmatprep.subr.mxu0 0.0
        %830 = vmatpush1.msra.mxu0 0.0
        %831 = vmatprep.subr.mxu0 0.0
        %832 = vmatpush1.msra.mxu0 0.0
        %833 = vmatprep.subr.mxu0 0.0
        %834 = vmatpush1.msra.mxu0 0.0
        %835 = vmatprep.subr.mxu0 0.0
        %836 = vmatpush1.msra.mxu0 0.0
        %837 = vmatprep.subr.mxu0 0.0
        %838 = vmatpush1.msra.mxu0 0.0
        %839 = vmatprep.subr.mxu0 0.0
        %840 = vmatpush1.msra.mxu0 0.0
        %841 = vmatprep.subr.mxu0 0.0
        %842 = vmatpush1.msra.mxu0 0.0
        %843 = vmatprep.subr.mxu0 0.0
        %844 = vmatpush1.msra.mxu0 0.0
        %845 = vmatprep.subr.mxu0 0.0
        %846 = vmatpush1.msra.mxu0 0.0
        %847 = vmatprep.subr.mxu0 0.0
        %848 = vmatpush1.msra.mxu0 0.0
        %849 = vmatprep.mubr.f32.mxu0 0.0
        %850 = vmatmul.mubr.f32.gmra.mrb[0].mxu0 %v769
        %v851 = vpop.f32.mrb[0].mxu0
        %v852 = vadd.f32 0.0, %v851
        %v853 = vpop.f32.mrb[0].mxu0
        %v854 = vadd.f32 0.0, %v853
        %855 = vmatprep.mubr.f32.mxu0 0.0
        %856 = vmatmul.mubr.f32.gmra.mrb[0].mxu0 %v772
        %v857 = vpop.f32.mrb[0].mxu0
        %v858 = vadd.f32 0.0, %v857
        %v859 = vpop.f32.mrb[0].mxu0
        %v860 = vadd.f32 0.0, %v859
        %861 = vmatprep.mubr.f32.mxu0 0.0
        %862 = vmatmul.mubr.f32.gmra.mrb[0].mxu0 %v775
        %v863 = vpop.f32.mrb[0].mxu0
        %v864 = vadd.f32 0.0, %v863
        %v865 = vpop.f32.mrb[0].mxu0
        %v866 = vadd.f32 0.0, %v865
        %867 = vmatprep.mubr.f32.mxu0 0.0
        %868 = vmatmul.mubr.f32.gmra.mrb[0].mxu0 %v778
        %v869 = vpop.f32.mrb[0].mxu0
        %v870 = vadd.f32 0.0, %v869
        %v871 = vpop.f32.mrb[0].mxu0
        %v872 = vadd.f32 0.0, %v871
        %873 = vdwg.mxu0
        %v874 = vadd.f32 %v739, %v852
        %v875 = vadd.f32 %v741, %v854
        %v876 = vadd.f32 %v745, %v858
        %v877 = vadd.f32 %v747, %v860
        %v878 = vadd.f32 %v751, %v864
        %v879 = vadd.f32 %v753, %v866
        %v880 = vadd.f32 %v757, %v870
        %v881 = vadd.f32 %v759, %v872
        %v882 = vld [vmem:[%s7] sm:$0xff]
        %v883 = vld [vmem:[%s7 + $0x8] sm:$0xff]
        %v884 = vld [vmem:[%s7 + $0x10] sm:$0xff]
        %v885 = vld [vmem:[%s7 + $0x18] sm:$0xff]
        %887 = vset.pattern.permute.xlu0 0
        %888 = vperm.xlu0 %887, %v882
        %v889 = vpop.permute.xlu0 %888
        %892 = vset.pattern.permute.xlu0 0
        %893 = vperm.xlu0 %892, %v883
        %v894 = vpop.permute.xlu0 %893
        %897 = vset.pattern.permute.xlu0 0
        %898 = vperm.xlu0 %897, %v884
        %v899 = vpop.permute.xlu0 %898
        %902 = vset.pattern.permute.xlu0 0
        %903 = vperm.xlu0 %902, %v885
        %v904 = vpop.permute.xlu0 %903
        %v906 = vadd.f32 %v874, %v889
        %v907 = vadd.f32 %v875, %v889
        %v908 = vadd.f32 %v876, %v894
        %v909 = vadd.f32 %v877, %v894
        %v910 = vadd.f32 %v878, %v899
        %v911 = vadd.f32 %v879, %v899
        %v912 = vadd.f32 %v880, %v904
        %v913 = vadd.f32 %v881, %v904
        %v914 = vmax.f32 %v906, 0.0
        %v915 = vmax.f32 %v907, 0.0
        %v916 = vmax.f32 %v908, 0.0
        %v917 = vmax.f32 %v909, 0.0
        %v918 = vmax.f32 %v910, 0.0
        %v919 = vmax.f32 %v911, 0.0
        %v920 = vmax.f32 %v912, 0.0
        %v921 = vmax.f32 %v913, 0.0
        %v922 = vld [vmem:[%s8] sm:$0xf]
        %v923 = vld [vmem:[%s9] sm:$0xf]
        %925 = vset.pattern.permute.xlu0 0
        %926 = vperm.xlu0 %925, %v923
        %v927 = vpop.permute.xlu0 %926
        %vm929 = vcmask 261120
        %v931 = vsel %vm929, %v922, 0
        %933 = vmatprep.subr.mxu0 %v915
        %934 = vmatpush1.msra.mxu0 %v914
        %935 = vmatprep.subr.mxu0 %v917
        %936 = vmatpush1.msra.mxu0 %v916
        %937 = vmatprep.subr.mxu0 %v919
        %938 = vmatpush1.msra.mxu0 %v918
        %939 = vmatprep.subr.mxu0 %v921
        %940 = vmatpush1.msra.mxu0 %v920
        %941 = vmatprep.subr.mxu0 0.0
        %942 = vmatpush1.msra.mxu0 0.0
        %943 = vmatprep.subr.mxu0 0.0
        %944 = vmatpush1.msra.mxu0 0.0
        %945 = vmatprep.subr.mxu0 0.0
        %946 = vmatpush1.msra.mxu0 0.0
        %947 = vmatprep.subr.mxu0 0.0
        %948 = vmatpush1.msra.mxu0 0.0
        %949 = vmatprep.subr.mxu0 0.0
        %950 = vmatpush1.msra.mxu0 0.0
        %951 = vmatprep.subr.mxu0 0.0
        %952 = vmatpush1.msra.mxu0 0.0
        %953 = vmatprep.subr.mxu0 0.0
        %954 = vmatpush1.msra.mxu0 0.0
        %955 = vmatprep.subr.mxu0 0.0
        %956 = vmatpush1.msra.mxu0 0.0
        %957 = vmatprep.subr.mxu0 0.0
        %958 = vmatpush1.msra.mxu0 0.0
        %959 = vmatprep.subr.mxu0 0.0
        %960 = vmatpush1.msra.mxu0 0.0
        %961 = vmatprep.subr.mxu0 0.0
        %962 = vmatpush1.msra.mxu0 0.0
        %963 = vmatprep.subr.mxu0 0.0
        %964 = vmatpush1.msra.mxu0 0.0
        %965 = vmatprep.subr.mxu0 0.0
        %966 = vmatpush1.msra.mxu0 0.0
        %967 = vmatprep.subr.mxu0 0.0
        %968 = vmatpush1.msra.mxu0 0.0
        %969 = vmatprep.subr.mxu0 0.0
        %970 = vmatpush1.msra.mxu0 0.0
        %971 = vmatprep.subr.mxu0 0.0
        %972 = vmatpush1.msra.mxu0 0.0
        %973 = vmatprep.subr.mxu0 0.0
        %974 = vmatpush1.msra.mxu0 0.0
        %975 = vmatprep.subr.mxu0 0.0
        %976 = vmatpush1.msra.mxu0 0.0
        %977 = vmatprep.subr.mxu0 0.0
        %978 = vmatpush1.msra.mxu0 0.0
        %979 = vmatprep.subr.mxu0 0.0
        %980 = vmatpush1.msra.mxu0 0.0
        %981 = vmatprep.subr.mxu0 0.0
        %982 = vmatpush1.msra.mxu0 0.0
        %983 = vmatprep.subr.mxu0 0.0
        %984 = vmatpush1.msra.mxu0 0.0
        %985 = vmatprep.subr.mxu0 0.0
        %986 = vmatpush1.msra.mxu0 0.0
        %987 = vmatprep.subr.mxu0 0.0
        %988 = vmatpush1.msra.mxu0 0.0
        %989 = vmatprep.subr.mxu0 0.0
        %990 = vmatpush1.msra.mxu0 0.0
        %991 = vmatprep.subr.mxu0 0.0
        %992 = vmatpush1.msra.mxu0 0.0
        %993 = vmatprep.subr.mxu0 0.0
        %994 = vmatpush1.msra.mxu0 0.0
        %995 = vmatprep.subr.mxu0 0.0
        %996 = vmatpush1.msra.mxu0 0.0
        %997 = vmatprep.mubr.f32.mxu0 0.0
        %998 = vmatmul.mubr.f32.gmra.mrb[0].mxu0 %v931
        %v999 = vpop.f32.mrb[0].mxu0
        %v1000 = vadd.f32 %v927, %v999
        %v1001 = vpop.f32.mrb[0].mxu0
        %v1002 = vadd.f32 %v927, %v1001
        %1003 = vdwg.mxu0
        %v1006 = vcombine.low %v1000, %v1002
        %1008 = vst [vmem:[%s486] sm:$0xff] %v1006
        %v1009 = vld [vmem:[%s531] sm:$0x3]
        %v1010 = vsel %vm560, %v1000, -inf
        %v1011 = vrot.slane %v1010, 4
        %v1012 = vmax.f32 %v1010, %v1011
        %v1013 = vrot.slane %v1012, 2
        %v1014 = vmax.f32 %v1012, %v1013
        %v1015 = vrot.slane %v1014, 1
        %v1016 = vmax.f32 %v1014, %v1015
        %v1017 = vsel %vm560, %v1002, -inf
        %v1018 = vrot.slane %v1017, 4
        %v1019 = vmax.f32 %v1017, %v1018
        %v1020 = vrot.slane %v1019, 2
        %v1021 = vmax.f32 %v1019, %v1020
        %v1022 = vrot.slane %v1021, 1
        %v1023 = vmax.f32 %v1021, %v1022
        %v1024 = vsub.f32 %v1000, %v1016
        %v1025 = vsub.f32 %v1002, %v1023
        %v1026 = vmul.f32 %v1024, 1.442695
        %v1027 = vpow.pop %v1026
        %v1028 = vmul.f32 %v1025, 1.442695
        %v1029 = vpow.pop %v1028
        %v1030 = vsel %vm560, %v1027, 0.0
        %v1031 = vrot.slane %v1030, 4
        %v1032 = vadd.f32 %v1030, %v1031
        %v1033 = vrot.slane %v1032, 2
        %v1034 = vadd.f32 %v1032, %v1033
        %v1035 = vrot.slane %v1034, 1
        %v1036 = vadd.f32 %v1034, %v1035
        %v1037 = vsel %vm560, %v1029, 0.0
        %v1038 = vrot.slane %v1037, 4
        %v1039 = vadd.f32 %v1037, %v1038
        %v1040 = vrot.slane %v1039, 2
        %v1041 = vadd.f32 %v1039, %v1040
        %v1042 = vrot.slane %v1041, 1
        %v1043 = vadd.f32 %v1041, %v1042
        %v1044 = vlog2.pop %v1036
        %v1045 = vmul.f32 %v1044, 0.6931472
        %v1046 = vlog2.pop %v1043
        %v1047 = vmul.f32 %v1046, 0.6931472
        %v1048 = vadd.f32 %v1016, %v1045
        %v1049 = vadd.f32 %v1023, %v1047
        %v1050 = vlaneseq
        %v1051 = vshrl.u32 %v1050, 7
        %v1052 = vlaneseq
        %v1053 = vshrl.u32 %v1052, 7
        %v1054 = vsub.s32 0, %v1053
        %v1055 = vrot.slane %v1009, %v1054
        %v1056 = vlaneseq
        %v1057 = vshrl.u32 %v1056, 7
        %v1058 = vsub.s32 1, %v1057
        %v1059 = vrot.slane %v1009, %v1058
        %vm1060 = vcmp.eq.s32.totalorder %v1051, %v1055
        %vm1061 = vcmp.eq.s32.totalorder %v1051, %v1059
        %v1062 = vsel %vm1060, %v1000, 0.0
        %v1063 = vsel %vm1061, %v1002, 0.0
        %v1064 = vsel %vm560, %v1062, 0.0
        %v1065 = vrot.slane %v1064, 4
        %v1066 = vadd.f32 %v1064, %v1065
        %v1067 = vrot.slane %v1066, 2
        %v1068 = vadd.f32 %v1066, %v1067
        %v1069 = vrot.slane %v1068, 1
        %v1070 = vadd.f32 %v1068, %v1069
        %v1071 = vsel %vm560, %v1063, 0.0
        %v1072 = vrot.slane %v1071, 4
        %v1073 = vadd.f32 %v1071, %v1072
        %v1074 = vrot.slane %v1073, 2
        %v1075 = vadd.f32 %v1073, %v1074
        %v1076 = vrot.slane %v1075, 1
        %v1077 = vadd.f32 %v1075, %v1076
        %s1078 = smul.u32 %s34, 256
        %v1079 = vlaneseq
        %v1080 = vand.u32 %v1079, 127
        %v1081 = vadd.s32 %v1080, 128
        %v1082 = vstv %s1078
        %v1083 = vadd.s32 %v1082, %v1080
        %v1084 = vadd.s32 %v1082, %v1081
        %vm1085 = vcmp.ge.s32.totalorder %v1009, 0
        %vm1086 = vcmp.lt.s32.totalorder %v1083, 256
        %vm1087 = vcmp.lt.s32.totalorder %v1084, 256
        %v1088 = vsel %vm1086, 1, 0
        %v1089 = vsel %vm1087, 1, 0
        %v1090 = vcombine.low %v1088, %v1089
        %v1092 = vunpack.c.l.s4 1966171168
        %v1093 = vunpack.c.0.s8 %v1092
        %v1094 = vlaneseq
        %v1095 = vshrl.u32 %v1094, 7
        %v1096 = vsub.s32 %v1093, %v1095
        %v1097 = vrot.slane %v1090, %v1096
        %v1099 = vunpack.c.l.s4 1966171168
        %v1100 = vunpack.c.0.s8 %v1099
        %v1101 = vlaneseq
        %v1102 = vshrl.u32 %v1101, 7
        %v1103 = vsub.s32 %v1100, %v1102
        %v1104 = vrot.slane %v1097, %v1103
        %vm1105 = vcmp.ne.s32.totalorder %v1104, 0
        %vm1106 = vmand %vm1085, %vm1105
        %v1107 = vsub.f32 %v1048, %v1070
        %v1108 = vsub.f32 %v1049, %v1077
        %v1111 = vcombine.low %v1107, %v1108
        %v1113 = vunpack.c.l.s4 1966171168
        %v1114 = vunpack.c.0.s8 %v1113
        %v1115 = vlaneseq
        %v1116 = vshrl.u32 %v1115, 7
        %v1117 = vsub.s32 %v1114, %v1116
        %v1118 = vrot.slane %v1111, %v1117
        %v1120 = vunpack.c.l.s4 1966171168
        %v1121 = vunpack.c.0.s8 %v1120
        %v1122 = vlaneseq
        %v1123 = vshrl.u32 %v1122, 7
        %v1124 = vsub.s32 %v1121, %v1123
        %v1125 = vrot.slane %v1118, %v1124
        %v1127 = vsel %vm1106, %v1125, 0.0
        %v1129 = vlaneseq
        %v1130 = vshrl.u32 %v1129, 7
        %v1131 = vsub.s32 0, %v1130
        %v1132 = vrot.slane %v1127, %v1131
        %v1133 = vlaneseq
        %v1134 = vshrl.u32 %v1133, 7
        %v1135 = vsub.s32 1, %v1134
        %v1136 = vrot.slane %v1127, %v1135
        %vm1139 = vcmask 1040384
        %v1140 = vsel %vm1139, %v1132, 0.0
        %v1141 = vsel %vm1139, %v1136, 0.0
        %v1142 = vadd.f32 %v1140, %v1141
        %1143 = vadd.xlane.f32.xlu0 %v1142
        %v1144 = vpop.xlane.xlu0 %1143
        %v1145 = vrot.slane %v1144, 4
        %v1146 = vadd.f32 %v1144, %v1145
        %v1147 = vrot.slane %v1146, 2
        %v1148 = vadd.f32 %v1146, %v1147
        %v1149 = vrot.slane %v1148, 1
        %v1150 = vadd.f32 %v1148, %v1149
        %s1151 = vtos %v1150
        %v1152 = vsel %vm1106, 1, 0
        %v1153 = vcvt.s32.f32 %v1152
        %v1155 = vlaneseq
        %v1156 = vshrl.u32 %v1155, 7
        %v1157 = vsub.s32 0, %v1156
        %v1158 = vrot.slane %v1153, %v1157
        %v1159 = vlaneseq
        %v1160 = vshrl.u32 %v1159, 7
        %v1161 = vsub.s32 1, %v1160
        %v1162 = vrot.slane %v1153, %v1161
        %v1165 = vsel %vm1139, %v1158, 0.0
        %v1166 = vsel %vm1139, %v1162, 0.0
        %v1167 = vadd.f32 %v1165, %v1166
        %1168 = vadd.xlane.f32.xlu0 %v1167
        %v1169 = vpop.xlane.xlu0 %1168
        %v1170 = vrot.slane %v1169, 4
        %v1171 = vadd.f32 %v1169, %v1170
        %v1172 = vrot.slane %v1171, 2
        %v1173 = vadd.f32 %v1171, %v1172
        %v1174 = vrot.slane %v1173, 1
        %v1175 = vadd.f32 %v1173, %v1174
        %s1176 = vtos %v1175
        %vm1177 = vcmp.eq.s32.totalorder %v1051, 0
        %vm1178 = vcmp.eq.s32.totalorder %v1080, 0
        %vm1179 = vmand %vm1177, %vm1178
        %vm1180 = vcmp.eq.s32.totalorder %v1051, 1
        %vm1181 = vmand %vm1180, %vm1178
        %v1182 = vstv %s1176
        %v1183 = vsel %vm1181, %v1182, 0.0
        %v1184 = vstv %s1151
        %v1185 = vsel %vm1179, %v1184, %v1183
        %1186 = vst [vmem:[%s493] sm:$0x3] %v1185
        %s1187 = sand.u32 %s289, 1
        %s1188 = scalar_lea.sflag [#allocation3], %s1187
        %s1189 = sand.u32 %s289, 1
        %s1190 = smul.addr %s1189, 8
        %s1191 = scalar_lea.vmem [#allocation2], %s1190
        %s1192 = sand.u32 %s317, 1
        %s1193 = scalar_lea.sflag [#allocation5], %s1192
        %s1194 = sand.u32 %s317, 1
        %s1195 = smul.addr %s1194, 2
        %s1196 = scalar_lea.vmem [#allocation4], %s1195
        // Predicated region
        $region61: #{tpu_custom_call.1} parent=59 // pred_check
          %p1197 = pneg %p299
        $region62: #{tpu_custom_call.1} parent=59 // pred_check_branch
          %1199 = sbr.rel (%p1197) target = $region64
        $region63: #{tpu_custom_call.1} parent=59 // pred_region
          %s1200 = smul.u32 2, %s34
          %s1202 = ssub.s32 128, 128
          %1203 = vsyncadd %s1188, %s1202
          %s1204 = smul.addr %s33, 2
          %s1205 = sadd.s32 %s1200, %s1204
          %s1206 = smul.addr %s1205, 64
          %s1207 = scalar_lea.hbm %s10, %s1206
          %s1209 = sshll.u32 %s1191, 4
          %s1210 = int_to_ptr.vmem [resolvable:$true] %s1209
          %1212 = dma.vmem_to_hbm [thread:$0]  %s1210, 128, %s1207, %s1188
        $region64: #{tpu_custom_call.1} parent=59 // pred_fallthru
          _
        // Predicated region
        $region65: #{tpu_custom_call.1} parent=59 // pred_check
          %p1213 = pneg %p327
        $region66: #{tpu_custom_call.1} parent=59 // pred_check_branch
          %1215 = sbr.rel (%p1213) target = $region68
        $region67: #{tpu_custom_call.1} parent=59 // pred_region
          %s1217 = ssub.s32 32, 32
          %1218 = vsyncadd %s1193, %s1217
          %s1219 = sadd.s32 %s34, %s33
          %s1220 = smul.addr %s1219, 32
          %s1221 = scalar_lea.hbm %s11, %s1220
          %s1223 = sshll.u32 %s1196, 4
          %s1224 = int_to_ptr.vmem [resolvable:$true] %s1223
          %1226 = dma.vmem_to_hbm [thread:$0]  %s1224, 32, %s1221, %s1193
        $region68: #{tpu_custom_call.1} parent=59 // pred_fallthru
          _
      $region60: #{tpu_custom_call.1} parent=5 // pred_fallthru
        _
      %p1227 = scmp.le.s32.totalorder 2, %s24
      // Predicated region
      $region69: #{tpu_custom_call.1} parent=5 // pred_check
        %p1228 = pneg %p1227
      $region70: #{tpu_custom_call.1} parent=5 // pred_check_branch
        %1230 = sbr.rel (%p1228) target = $region72
      $region71: #{tpu_custom_call.1} parent=5 // pred_region
        %s1231 = ssub.s32 %s24, 2
        // Predicated region
        $region73: #{tpu_custom_call.1} parent=71 // pred_check
          %p1232 = pneg %p305
        $region74: #{tpu_custom_call.1} parent=71 // pred_check_branch
          %1234 = sbr.rel (%p1232) target = $region76
        $region75: #{tpu_custom_call.1} parent=71 // pred_region
          %s1235 = sand.u32 %s290, 1
          %s1236 = scalar_lea.sflag [#allocation3], %s1235
          %s1237 = sand.u32 %s290, 1
          %s1238 = smul.addr %s1237, 8
          %s1239 = scalar_lea.vmem [#allocation2], %s1238
          %1240 = dma.done %s1236, 128
        $region76: #{tpu_custom_call.1} parent=71 // pred_fallthru
          _
        // Predicated region
        $region77: #{tpu_custom_call.1} parent=71 // pred_check
          %p1241 = pneg %p333
        $region78: #{tpu_custom_call.1} parent=71 // pred_check_branch
          %1243 = sbr.rel (%p1241) target = $region80
        $region79: #{tpu_custom_call.1} parent=71 // pred_region
          %s1244 = sand.u32 %s318, 1
          %s1245 = scalar_lea.sflag [#allocation5], %s1244
          %s1246 = sand.u32 %s318, 1
          %s1247 = smul.addr %s1246, 2
          %s1248 = scalar_lea.vmem [#allocation4], %s1247
          %1249 = dma.done %s1245, 32
        $region80: #{tpu_custom_call.1} parent=71 // pred_fallthru
          _
      $region72: #{tpu_custom_call.1} parent=5 // pred_fallthru
        _
    $region6: #{tpu_custom_call.1} parent=1 // loop_footer
      %s28 = sadd.s32 1, %s24
    $region7: #{tpu_custom_call.1} parent=1 // loop_footer_branch
      %23 = sbr.rel target = $region3
    $region8: #{tpu_custom_call.1} parent=1 // loop_exit
      _
    %1250 = vsyncpa [#allocation3], 1
    %s1251 = scalar_lea.sflag [#allocation3], 1
    %1252 = vsyncpa %s1251, 1
    %1253 = vsyncpa [#allocation5], 1
    %s1254 = scalar_lea.sflag [#allocation5], 1
    %1255 = vsyncpa %s1254, 1

</llo_original>
